<compile_context>
chip_gen: v5e
topology: v5e:2x2
jax: 0.10.0
libtpu: 0.0.40
codegen_flags: <defaults>
</compile_context>

<pallas_src>
import functools
import math

import jax
import jax.numpy as jnp
from jax.experimental import pallas as pl
from jax.experimental.pallas import tpu as pltpu


# ----------------------------- config ---------------------------------------
class SiglipVisionConfig:
    def __init__(self, hidden_size=768, intermediate_size=3072, num_hidden_layers=12,
                 num_attention_layers=12, num_attention_heads=12, num_channels=3,
                 image_size=224, patch_size=16, layer_norm_eps=1e-6,
                 attention_dropout=0.0, num_image_tokens=None, **kwargs):
        self.hidden_size = hidden_size
        self.intermediate_size = intermediate_size
        self.num_hidden_layers = num_hidden_layers
        self.num_attention_layers = num_attention_layers
        self.num_attention_heads = num_attention_heads
        self.num_channels = num_channels
        self.image_size = image_size
        self.patch_size = patch_size
        self.layer_norm_eps = layer_norm_eps
        self.attention_dropout = attention_dropout
        self.num_image_tokens = num_image_tokens


_GELU_C = math.sqrt(2.0 / math.pi)


# ----------------------------- Pallas kernel --------------------------------
def _encoder_kernel(x_ref,
                    ln1_w_ref, ln1_b_ref,
                    qkv_w_ref, qkv_b_ref,
                    o_w_ref, o_b_ref,
                    ln2_w_ref, ln2_b_ref,
                    fc1_w_ref, fc1_b_ref,
                    fc2_w_ref, fc2_b_ref,
                    out_ref,
                    x_sc,
                    *, b_local, seq, seq_real, dim, heads, head_dim, eps):
    """All encoder layers for one batch-block.

    grid = (batch_blocks, num_layers); the layer axis is "arbitrary".
    Activation (rows, D) lives in the VMEM scratch x_sc across layer iters.
    """
    layer = pl.program_id(1)
    rows = b_local * seq

    @pl.when(layer == 0)
    def _():
        x_sc[...] = x_ref[...]

    x = x_sc[...]                                     # (rows, D) f32

    def layer_norm(v, w_ref, b_ref):
        # Single-pass mean / E[x^2] (fewer f32 reduction passes; clamp for safety).
        mu = jnp.mean(v, axis=-1, keepdims=True)
        ms = jnp.mean(v * v, axis=-1, keepdims=True)
        var = jnp.maximum(ms - mu * mu, 0.0)
        return (v - mu) * jax.lax.rsqrt(var + eps) * w_ref[0] + b_ref[0]

    # ---- self-attention block ---------------------------------------------
    h = layer_norm(x, ln1_w_ref, ln1_b_ref).astype(jnp.bfloat16)
    # Fused QKV projection (q scale folded into W/b). Cast to bf16 right away
    # and add the bias in bf16 to keep the big intermediate half-sized.
    qkv = jnp.dot(h, qkv_w_ref[0],
                  preferred_element_type=jnp.float32).astype(jnp.bfloat16)
    qkv = qkv + qkv_b_ref[0]                          # (rows, 3D) bf16

    # Lane-aligned [Q|K|V] slices (offsets 0, D, 2D are multiples of 128 at
    # production sizes), then put the head index on a non-lane axis once.
    q = qkv[:, :dim].reshape(b_local, seq, heads, head_dim)
    k = qkv[:, dim:2 * dim].reshape(b_local, seq, heads, head_dim)
    v = qkv[:, 2 * dim:].reshape(b_local, seq, heads, head_dim)

    key_valid = None
    if seq_real < seq:          # static (trace-time) padding mask for padded keys
        key_valid = jax.lax.broadcasted_iota(jnp.int32, (1, 1, seq), 2) < seq_real

    ctx_parts = []
    for hi in range(heads):
        qh = q[:, :, hi, :]                            # (b, S, hd) bf16
        kh = k[:, :, hi, :]
        vh = v[:, :, hi, :]
        s = jnp.einsum('bqd,bkd->bqk', qh, kh,
                       preferred_element_type=jnp.float32)   # (b, S, S) f32
        if key_valid is not None:
            s = jnp.where(key_valid, s, -1e30)
        s = s - jnp.max(s, axis=-1, keepdims=True)
        p = jnp.exp(s)
        p = p / jnp.sum(p, axis=-1, keepdims=True)     # exact softmax denom
        # attention dropout p=0.0 -> identity
        oh = jnp.einsum('bqk,bkd->bqd', p.astype(jnp.bfloat16), vh,
                        preferred_element_type=jnp.float32)  # (b, S, hd) f32
        ctx_parts.append(oh.astype(jnp.bfloat16))
    # Lane-dense (rows, D) context -> ONE full-depth out_proj matmul.
    ctx = jnp.concatenate(ctx_parts, axis=-1).reshape(rows, dim)
    attn = jnp.dot(ctx, o_w_ref[0],
                   preferred_element_type=jnp.float32) + o_b_ref[0]
    x = x + attn                                       # residual (f32)

    # ---- MLP block ----------------------------------------------------------
    h2 = layer_norm(x, ln2_w_ref, ln2_b_ref).astype(jnp.bfloat16)
    m = jnp.dot(h2, fc1_w_ref[0],
                preferred_element_type=jnp.float32) + fc1_b_ref[0]       # (rows, I)
    m = 0.5 * m * (1.0 + jnp.tanh(_GELU_C * (m + 0.044715 * m * m * m)))  # gelu(tanh)
    m = jnp.dot(m.astype(jnp.bfloat16), fc2_w_ref[0],
                preferred_element_type=jnp.float32) + fc2_b_ref[0]       # (rows, D)
    x = x + m                                          # residual

    x_sc[...] = x

    @pl.when(layer == pl.num_programs(1) - 1)
    def _():
        out_ref[...] = x


def make_encoder_call(num_layers, B, S_pad, S_real, D, I, H, eps, *,
                      num_batch_blocks=1):
    assert D % H == 0 and B % num_batch_blocks == 0
    assert S_pad % 8 == 0
    b_local = B // num_batch_blocks
    rows = b_local * S_pad
    hd = D // H

    kernel = functools.partial(_encoder_kernel, b_local=b_local, seq=S_pad,
                               seq_real=S_real, dim=D, heads=H, head_dim=hd,
                               eps=eps)

    act_spec = pl.BlockSpec((rows, D), lambda bt, l: (bt, 0))

    def w_spec(r, c):        # stacked per-layer weight (L, r, c), streamed over l
        return pl.BlockSpec((1, r, c), lambda bt, l: (l, 0, 0))

    in_specs = [
        act_spec,
        w_spec(1, D), w_spec(1, D),          # ln1 weight, bias
        w_spec(D, 3 * D), w_spec(1, 3 * D),  # fused qkv weight, bias
        w_spec(D, D), w_spec(1, D),          # out_proj weight, bias
        w_spec(1, D), w_spec(1, D),          # ln2 weight, bias
        w_spec(D, I), w_spec(1, I),          # fc1
        w_spec(I, D), w_spec(1, D),          # fc2
    ]

    # Explicit VMEM budget: ~100 MiB on v5e/v6e, capped by physical on v7x.
    try:
        vmem_cap = int(pltpu.get_tpu_info().vmem_capacity_bytes)
    except Exception:
        vmem_cap = 64 * 1024 * 1024
    vmem_limit = min(100 * 1024 * 1024, int(vmem_cap * 0.85))

    # Advisory cost estimate for XLA scheduling around the custom call.
    rows_total = B * S_pad
    flops = num_layers * (
        2 * rows_total * D * 3 * D            # qkv proj
        + 2 * 2 * B * H * S_pad * S_pad * hd  # QK^T + PV
        + 2 * rows_total * D * D              # out proj
        + 2 * 2 * rows_total * D * I)         # fc1 + fc2
    transcendentals = num_layers * (B * H * S_pad * S_pad + rows_total * I)
    w_bytes_layer = 2 * (3 * D * D + D * D + 2 * D * I) + 4 * (8 * D + 2 * I)
    bytes_accessed = (num_batch_blocks * num_layers * w_bytes_layer
                      + 2 * rows_total * D * 4)

    return pl.pallas_call(
        kernel,
        out_shape=jax.ShapeDtypeStruct((B * S_pad, D), jnp.float32),
        grid=(num_batch_blocks, num_layers),
        in_specs=in_specs,
        out_specs=act_spec,
        scratch_shapes=[pltpu.VMEM((rows, D), jnp.float32)],
        compiler_params=pltpu.CompilerParams(
            dimension_semantics=("parallel", "arbitrary"),
            vmem_limit_bytes=vmem_limit),
        cost_estimate=pl.CostEstimate(flops=int(flops),
                                      transcendentals=int(transcendentals),
                                      bytes_accessed=int(bytes_accessed)),
    )


# ----------------------------- params ----------------------------------------
def init_raw_params(key, config):
    """Per-layer f32 parameters in the torch layout (weights pre-transposed)."""
    D, I = config.hidden_size, config.intermediate_size
    layers = []
    for _ in range(config.num_attention_layers):
        key, *ks = jax.random.split(key, 17)
        n = lambda k, shape, s=0.02: s * jax.random.normal(k, shape, jnp.float32)
        layers.append(dict(
            ln1_w=1.0 + n(ks[0], (D,)), ln1_b=n(ks[1], (D,)),
            q_w=n(ks[2], (D, D)), q_b=n(ks[3], (D,)),
            k_w=n(ks[4], (D, D)), k_b=n(ks[5], (D,)),
            v_w=n(ks[6], (D, D)), v_b=n(ks[7], (D,)),
            o_w=n(ks[8], (D, D)), o_b=n(ks[9], (D,)),
            ln2_w=1.0 + n(ks[10], (D,)), ln2_b=n(ks[11], (D,)),
            fc1_w=n(ks[12], (D, I)), fc1_b=n(ks[13], (I,)),
            fc2_w=n(ks[14], (I, D)), fc2_b=n(ks[15], (D,)),
        ))
    return layers, key


def pack_params(raw_layers, config):
    """Stack per-layer params, fuse QKV, fold attention scale, cast matmul
    weights (and the qkv bias) to bf16; layernorm / other biases stay f32."""
    D = config.hidden_size
    H = config.num_attention_heads
    hd = D // H
    scale = hd ** -0.5

    def stack(fn):
        return jnp.stack([fn(p) for p in raw_layers], axis=0)

    return dict(
        ln1_w=stack(lambda p: p["ln1_w"][None, :]),
        ln1_b=stack(lambda p: p["ln1_b"][None, :]),
        qkv_w=stack(lambda p: jnp.concatenate(
            [p["q_w"] * scale, p["k_w"], p["v_w"]], axis=1)).astype(jnp.bfloat16),
        qkv_b=stack(lambda p: jnp.concatenate(
            [p["q_b"] * scale, p["k_b"], p["v_b"]], axis=0)[None, :]
        ).astype(jnp.bfloat16),
        o_w=stack(lambda p: p["o_w"]).astype(jnp.bfloat16),
        o_b=stack(lambda p: p["o_b"][None, :]),
        ln2_w=stack(lambda p: p["ln2_w"][None, :]),
        ln2_b=stack(lambda p: p["ln2_b"][None, :]),
        fc1_w=stack(lambda p: p["fc1_w"]).astype(jnp.bfloat16),
        fc1_b=stack(lambda p: p["fc1_b"][None, :]),
        fc2_w=stack(lambda p: p["fc2_w"]).astype(jnp.bfloat16),
        fc2_b=stack(lambda p: p["fc2_b"][None, :]),
    )


# ----------------------------- wrapper ----------------------------------------
def siglip_encoder_pallas(inputs_embeds, packed, config, *, num_batch_blocks=None):
    B, S, D = inputs_embeds.shape
    L = packed["qkv_w"].shape[0]

    # Pad S to a multiple of 8 (padded keys are masked inside the kernel).
    S_pad = ((S + 7) // 8) * 8
    x = inputs_embeds
    if S_pad != S:
        x = jnp.pad(x, ((0, 0), (0, S_pad - S), (0, 0)))

    if num_batch_blocks is None:
        # Prefer 2 batch blocks so the leading "parallel" axis can shard
        # across v7x's two TensorCores.
        num_batch_blocks = 2 if (B % 2 == 0 and ((B // 2) * S_pad) % 8 == 0) else 1

    call = make_encoder_call(L, B, S_pad, S, D, config.intermediate_size,
                             config.num_attention_heads, config.layer_norm_eps,
                             num_batch_blocks=num_batch_blocks)
    out = call(x.reshape(B * S_pad, D),
               packed["ln1_w"], packed["ln1_b"],
               packed["qkv_w"], packed["qkv_b"],
               packed["o_w"], packed["o_b"],
               packed["ln2_w"], packed["ln2_b"],
               packed["fc1_w"], packed["fc1_b"],
               packed["fc2_w"], packed["fc2_b"])
    return out.reshape(B, S_pad, D)[:, :S, :]


# ----------------------------- pure-JAX reference ----------------------------
def siglip_encoder_ref(x, raw_layers, config):
    D = config.hidden_size
    H = config.num_attention_heads
    hd = D // H
    eps = config.layer_norm_eps

    def ln(v, w, b):
        mu = jnp.mean(v, axis=-1, keepdims=True)
        var = jnp.mean((v - mu) ** 2, axis=-1, keepdims=True)
        return (v - mu) / jnp.sqrt(var + eps) * w + b

    for p in raw_layers:
        res = x
        h = ln(x, p["ln1_w"], p["ln1_b"])
        q = h @ p["q_w"] + p["q_b"]
        k = h @ p["k_w"] + p["k_b"]
        v = h @ p["v_w"] + p["v_b"]
        B, S, _ = h.shape
        q = q.reshape(B, S, H, hd).transpose(0, 2, 1, 3)
        k = k.reshape(B, S, H, hd).transpose(0, 2, 1, 3)
        v = v.reshape(B, S, H, hd).transpose(0, 2, 1, 3)
        s = jnp.einsum("bhqd,bhkd->bhqk", q, k) * (hd ** -0.5)
        a = jax.nn.softmax(s, axis=-1)
        o = jnp.einsum("bhqk,bhkd->bhqd", a, v).transpose(0, 2, 1, 3).reshape(B, S, D)
        o = o @ p["o_w"] + p["o_b"]
        x = res + o
        res = x
        h = ln(x, p["ln2_w"], p["ln2_b"])
        m = h @ p["fc1_w"] + p["fc1_b"]
        m = 0.5 * m * (1.0 + jnp.tanh(_GELU_C * (m + 0.044715 * m ** 3)))
        m = m @ p["fc2_w"] + p["fc2_b"]
        x = res + m
    return x


# ----------------------------- main ------------------------------------------
if __name__ == "__main__":
    config = SiglipVisionConfig(hidden_size=128, intermediate_size=256,
                                num_hidden_layers=2, num_attention_layers=2,
                                num_attention_heads=2)
    B, S = 2, 16

    key = jax.random.PRNGKey(0)
    raw_params, key = init_raw_params(key, config)
    packed = pack_params(raw_params, config)
    inputs_embeds = jax.random.normal(key, (B, S, config.hidden_size), jnp.float32)

    out = siglip_encoder_pallas(inputs_embeds, packed, config)
    out = jax.block_until_ready(out)

    ref = siglip_encoder_ref(inputs_embeds, raw_params, config)
    max_err = float(jnp.max(jnp.abs(out - ref)))
    assert out.shape == (B, S, config.hidden_size)
    # bf16 matmul weights/activations vs f32 reference; errors stay well below this.
    assert max_err < 2e-2, f"mismatch vs reference: {max_err}"

    print("KERNEL_OK")
</pallas_src>

<mosaic_0001>
module attributes {stable_mosaic.version = 11 : i64} {
  func.func @_encoder_kernel(%arg0: i32, %arg1: i32, %arg2: memref<16x128xf32, #tpu.memory_space<vmem>>, %arg3: memref<1x1x128xf32, #tpu.memory_space<vmem>>, %arg4: memref<1x1x128xf32, #tpu.memory_space<vmem>>, %arg5: memref<1x128x384xbf16, #tpu.memory_space<vmem>>, %arg6: memref<1x1x384xbf16, #tpu.memory_space<vmem>>, %arg7: memref<1x128x128xbf16, #tpu.memory_space<vmem>>, %arg8: memref<1x1x128xf32, #tpu.memory_space<vmem>>, %arg9: memref<1x1x128xf32, #tpu.memory_space<vmem>>, %arg10: memref<1x1x128xf32, #tpu.memory_space<vmem>>, %arg11: memref<1x128x256xbf16, #tpu.memory_space<vmem>>, %arg12: memref<1x1x256xf32, #tpu.memory_space<vmem>>, %arg13: memref<1x256x128xbf16, #tpu.memory_space<vmem>>, %arg14: memref<1x1x128xf32, #tpu.memory_space<vmem>>, %arg15: memref<16x128xf32, #tpu.memory_space<vmem>>, %arg16: memref<16x128xf32, #tpu.memory_space<vmem>>) attributes {dimension_semantics = [#tpu.dimension_semantics<parallel>, #tpu.dimension_semantics<arbitrary>], iteration_bounds = array<i64: 2, 2>, scalar_prefetch = 0 : i64, scratch_operands = 1 : i64, tpu.core_type = #tpu.core_type<tc>, window_params = [{transform_indices = @transform_0, window_bounds = array<i64: 16, 128>}, {transform_indices = @transform_1, window_bounds = array<i64: 1, 1, 128>}, {transform_indices = @transform_2, window_bounds = array<i64: 1, 1, 128>}, {transform_indices = @transform_3, window_bounds = array<i64: 1, 128, 384>}, {transform_indices = @transform_4, window_bounds = array<i64: 1, 1, 384>}, {transform_indices = @transform_5, window_bounds = array<i64: 1, 128, 128>}, {transform_indices = @transform_6, window_bounds = array<i64: 1, 1, 128>}, {transform_indices = @transform_7, window_bounds = array<i64: 1, 1, 128>}, {transform_indices = @transform_8, window_bounds = array<i64: 1, 1, 128>}, {transform_indices = @transform_9, window_bounds = array<i64: 1, 128, 256>}, {transform_indices = @transform_10, window_bounds = array<i64: 1, 1, 256>}, {transform_indices = @transform_11, window_bounds = array<i64: 1, 256, 128>}, {transform_indices = @transform_12, window_bounds = array<i64: 1, 1, 128>}, {transform_indices = @transform_13, window_bounds = array<i64: 16, 128>}]} {
    %c0_i32 = arith.constant 0 : i32
    %0 = arith.cmpi eq, %arg1, %c0_i32 : i32
    %1 = arith.extui %0 : i1 to i32
    %c0_i32_0 = arith.constant 0 : i32
    %2 = arith.cmpi ne, %1, %c0_i32_0 : i32
    scf.if %2 {
      %c0_68 = arith.constant 0 : index
      %c0_69 = arith.constant 0 : index
      %157 = vector.load %arg2[%c0_68, %c0_69] : memref<16x128xf32, #tpu.memory_space<vmem>>, vector<16x128xf32>
      %c0_70 = arith.constant 0 : index
      %c0_71 = arith.constant 0 : index
      %158 = vector.load %arg16[%c0_70, %c0_71] : memref<16x128xf32, #tpu.memory_space<vmem>>, vector<16x128xf32>
      tpu.vector_store %arg16[%c0_70, %c0_71], %157 {strides = array<i32>} : memref<16x128xf32, #tpu.memory_space<vmem>>, vector<16x128xf32>,
    } else {
    }
    %c0 = arith.constant 0 : index
    %c0_1 = arith.constant 0 : index
    %3 = vector.load %arg16[%c0, %c0_1] : memref<16x128xf32, #tpu.memory_space<vmem>>, vector<16x128xf32>
    %cst = arith.constant dense<0.000000e+00> : vector<16xf32>
    %4 = vector.multi_reduction <add>, %3, %cst [1] : vector<16x128xf32> to vector<16xf32>
    %5 = vector.shape_cast %4 : vector<16xf32> to vector<16x1xf32>
    %cst_2 = arith.constant 1.280000e+02 : f32
    %6 = vector.broadcast %cst_2 : f32 to vector<16x1xf32>
    %7 = arith.divf %5, %6 : vector<16x1xf32>
    %8 = arith.mulf %3, %3 : vector<16x128xf32>
    %cst_3 = arith.constant dense<0.000000e+00> : vector<16xf32>
    %9 = vector.multi_reduction <add>, %8, %cst_3 [1] : vector<16x128xf32> to vector<16xf32>
    %10 = vector.shape_cast %9 : vector<16xf32> to vector<16x1xf32>
    %cst_4 = arith.constant 1.280000e+02 : f32
    %11 = vector.broadcast %cst_4 : f32 to vector<16x1xf32>
    %12 = arith.divf %10, %11 : vector<16x1xf32>
    %13 = arith.mulf %7, %7 : vector<16x1xf32>
    %14 = arith.subf %12, %13 : vector<16x1xf32>
    %cst_5 = arith.constant 0.000000e+00 : f32
    %15 = vector.broadcast %cst_5 : f32 to vector<16x1xf32>
    %16 = arith.maximumf %14, %15 : vector<16x1xf32>
    %17 = vector.broadcast %7 : vector<16x1xf32> to vector<16x128xf32>
    %18 = arith.subf %3, %17 : vector<16x128xf32>
    %cst_6 = arith.constant 9.99999997E-7 : f32
    %19 = vector.broadcast %cst_6 : f32 to vector<16x1xf32>
    %20 = arith.addf %16, %19 : vector<16x1xf32>
    %21 = math.rsqrt %20 : vector<16x1xf32>
    %22 = vector.broadcast %21 : vector<16x1xf32> to vector<16x128xf32>
    %23 = arith.mulf %18, %22 : vector<16x128xf32>
    %c0_7 = arith.constant 0 : index
    %c0_8 = arith.constant 0 : index
    %c0_9 = arith.constant 0 : index
    %24 = vector.load %arg3[%c0_7, %c0_8, %c0_9] : memref<1x1x128xf32, #tpu.memory_space<vmem>>, vector<1x1x128xf32>
    %25 = vector.shape_cast %24 : vector<1x1x128xf32> to vector<1x128xf32>
    %26 = vector.broadcast %25 : vector<1x128xf32> to vector<16x128xf32>
    %27 = arith.mulf %23, %26 : vector<16x128xf32>
    %c0_10 = arith.constant 0 : index
    %c0_11 = arith.constant 0 : index
    %c0_12 = arith.constant 0 : index
    %28 = vector.load %arg4[%c0_10, %c0_11, %c0_12] : memref<1x1x128xf32, #tpu.memory_space<vmem>>, vector<1x1x128xf32>
    %29 = vector.shape_cast %28 : vector<1x1x128xf32> to vector<1x128xf32>
    %30 = vector.broadcast %29 : vector<1x128xf32> to vector<16x128xf32>
    %31 = arith.addf %27, %30 : vector<16x128xf32>
    %32 = arith.truncf %31 : vector<16x128xf32> to vector<16x128xbf16>
    %c0_13 = arith.constant 0 : index
    %c0_14 = arith.constant 0 : index
    %c0_15 = arith.constant 0 : index
    %33 = vector.load %arg5[%c0_13, %c0_14, %c0_15] : memref<1x128x384xbf16, #tpu.memory_space<vmem>>, vector<1x128x384xbf16>
    %34 = vector.shape_cast %33 : vector<1x128x384xbf16> to vector<128x384xbf16>
    %cst_16 = arith.constant dense<0.000000e+00> : vector<16x384xf32>
    %35 = tpu.matmul %32, %34, %cst_16 {dimension_numbers = #tpu.dot_dimension_numbers<[1], [0], [0], [1], [0, 0, 1, 1], [], []>} : vector<16x128xbf16>, vector<128x384xbf16>, vector<16x384xf32> -> vector<16x384xf32>
    %36 = arith.truncf %35 : vector<16x384xf32> to vector<16x384xbf16>
    %c0_17 = arith.constant 0 : index
    %c0_18 = arith.constant 0 : index
    %c0_19 = arith.constant 0 : index
    %37 = vector.load %arg6[%c0_17, %c0_18, %c0_19] : memref<1x1x384xbf16, #tpu.memory_space<vmem>>, vector<1x1x384xbf16>
    %38 = vector.shape_cast %37 : vector<1x1x384xbf16> to vector<1x384xbf16>
    %39 = vector.broadcast %38 : vector<1x384xbf16> to vector<16x384xbf16>
    %40 = arith.addf %36, %39 : vector<16x384xbf16>
    %41 = vector.extract_strided_slice %40 {offsets = [0, 0], sizes = [16, 128], strides = [1, 1]} : vector<16x384xbf16> to vector<16x128xbf16>
    %42 = vector.shape_cast %41 : vector<16x128xbf16> to vector<1x16x2x64xbf16>
    %43 = vector.extract_strided_slice %40 {offsets = [0, 128], sizes = [16, 128], strides = [1, 1]} : vector<16x384xbf16> to vector<16x128xbf16>
    %44 = vector.shape_cast %43 : vector<16x128xbf16> to vector<1x16x2x64xbf16>
    %45 = vector.extract_strided_slice %40 {offsets = [0, 256], sizes = [16, 128], strides = [1, 1]} : vector<16x384xbf16> to vector<16x128xbf16>
    %46 = vector.shape_cast %45 : vector<16x128xbf16> to vector<1x16x2x64xbf16>
    %47 = vector.extract_strided_slice %42 {offsets = [0, 0, 0, 0], sizes = [1, 16, 1, 64], strides = [1, 1, 1, 1]} : vector<1x16x2x64xbf16> to vector<1x16x1x64xbf16>
    %48 = vector.shape_cast %47 : vector<1x16x1x64xbf16> to vector<1x16x64xbf16>
    %49 = vector.extract_strided_slice %44 {offsets = [0, 0, 0, 0], sizes = [1, 16, 1, 64], strides = [1, 1, 1, 1]} : vector<1x16x2x64xbf16> to vector<1x16x1x64xbf16>
    %50 = vector.shape_cast %49 : vector<1x16x1x64xbf16> to vector<1x16x64xbf16>
    %51 = vector.extract_strided_slice %46 {offsets = [0, 0, 0, 0], sizes = [1, 16, 1, 64], strides = [1, 1, 1, 1]} : vector<1x16x2x64xbf16> to vector<1x16x1x64xbf16>
    %52 = vector.shape_cast %51 : vector<1x16x1x64xbf16> to vector<1x16x64xbf16>
    "tpu.trace_start"() <{level = 10 : i32, message = "bqd,bkd->bqk"}> : () -> ()
    %cst_20 = arith.constant dense<0.000000e+00> : vector<1x16x16xf32>
    %53 = tpu.matmul %48, %50, %cst_20 {dimension_numbers = #tpu.dot_dimension_numbers<[2], [2], [1], [1], [0, 0, 0, 1, 1, 1], [0], [0]>} : vector<1x16x64xbf16>, vector<1x16x64xbf16>, vector<1x16x16xf32> -> vector<1x16x16xf32>
    "tpu.trace_stop"() : () -> ()
    %cst_21 = arith.constant dense<0xFF800000> : vector<1x16xf32>
    %54 = vector.multi_reduction <maximumf>, %53, %cst_21 [2] : vector<1x16x16xf32> to vector<1x16xf32>
    %55 = vector.shape_cast %54 : vector<1x16xf32> to vector<1x16x1xf32>
    %56 = vector.broadcast %55 : vector<1x16x1xf32> to vector<1x16x16xf32>
    %57 = arith.subf %53, %56 : vector<1x16x16xf32>
    %58 = math.exp %57 : vector<1x16x16xf32>
    %cst_22 = arith.constant dense<0.000000e+00> : vector<1x16xf32>
    %59 = vector.multi_reduction <add>, %58, %cst_22 [2] : vector<1x16x16xf32> to vector<1x16xf32>
    %60 = vector.shape_cast %59 : vector<1x16xf32> to vector<1x16x1xf32>
    %61 = vector.broadcast %60 : vector<1x16x1xf32> to vector<1x16x16xf32>
    %62 = arith.divf %58, %61 : vector<1x16x16xf32>
    %63 = arith.truncf %62 : vector<1x16x16xf32> to vector<1x16x16xbf16>
    "tpu.trace_start"() <{level = 10 : i32, message = "bqk,bkd->bqd"}> : () -> ()
    %cst_23 = arith.constant dense<0.000000e+00> : vector<1x16x64xf32>
    %64 = tpu.matmul %63, %52, %cst_23 {dimension_numbers = #tpu.dot_dimension_numbers<[2], [1], [1], [2], [0, 0, 0, 1, 1, 2], [0], [0]>} : vector<1x16x16xbf16>, vector<1x16x64xbf16>, vector<1x16x64xf32> -> vector<1x16x64xf32>
    "tpu.trace_stop"() : () -> ()
    %65 = arith.truncf %64 : vector<1x16x64xf32> to vector<1x16x64xbf16>
    %66 = vector.extract_strided_slice %42 {offsets = [0, 0, 1, 0], sizes = [1, 16, 1, 64], strides = [1, 1, 1, 1]} : vector<1x16x2x64xbf16> to vector<1x16x1x64xbf16>
    %67 = vector.shape_cast %66 : vector<1x16x1x64xbf16> to vector<1x16x64xbf16>
    %68 = vector.extract_strided_slice %44 {offsets = [0, 0, 1, 0], sizes = [1, 16, 1, 64], strides = [1, 1, 1, 1]} : vector<1x16x2x64xbf16> to vector<1x16x1x64xbf16>
    %69 = vector.shape_cast %68 : vector<1x16x1x64xbf16> to vector<1x16x64xbf16>
    %70 = vector.extract_strided_slice %46 {offsets = [0, 0, 1, 0], sizes = [1, 16, 1, 64], strides = [1, 1, 1, 1]} : vector<1x16x2x64xbf16> to vector<1x16x1x64xbf16>
    %71 = vector.shape_cast %70 : vector<1x16x1x64xbf16> to vector<1x16x64xbf16>
    "tpu.trace_start"() <{level = 10 : i32, message = "bqd,bkd->bqk"}> : () -> ()
    %cst_24 = arith.constant dense<0.000000e+00> : vector<1x16x16xf32>
    %72 = tpu.matmul %67, %69, %cst_24 {dimension_numbers = #tpu.dot_dimension_numbers<[2], [2], [1], [1], [0, 0, 0, 1, 1, 1], [0], [0]>} : vector<1x16x64xbf16>, vector<1x16x64xbf16>, vector<1x16x16xf32> -> vector<1x16x16xf32>
    "tpu.trace_stop"() : () -> ()
    %cst_25 = arith.constant dense<0xFF800000> : vector<1x16xf32>
    %73 = vector.multi_reduction <maximumf>, %72, %cst_25 [2] : vector<1x16x16xf32> to vector<1x16xf32>
    %74 = vector.shape_cast %73 : vector<1x16xf32> to vector<1x16x1xf32>
    %75 = vector.broadcast %74 : vector<1x16x1xf32> to vector<1x16x16xf32>
    %76 = arith.subf %72, %75 : vector<1x16x16xf32>
    %77 = math.exp %76 : vector<1x16x16xf32>
    %cst_26 = arith.constant dense<0.000000e+00> : vector<1x16xf32>
    %78 = vector.multi_reduction <add>, %77, %cst_26 [2] : vector<1x16x16xf32> to vector<1x16xf32>
    %79 = vector.shape_cast %78 : vector<1x16xf32> to vector<1x16x1xf32>
    %80 = vector.broadcast %79 : vector<1x16x1xf32> to vector<1x16x16xf32>
    %81 = arith.divf %77, %80 : vector<1x16x16xf32>
    %82 = arith.truncf %81 : vector<1x16x16xf32> to vector<1x16x16xbf16>
    "tpu.trace_start"() <{level = 10 : i32, message = "bqk,bkd->bqd"}> : () -> ()
    %cst_27 = arith.constant dense<0.000000e+00> : vector<1x16x64xf32>
    %83 = tpu.matmul %82, %71, %cst_27 {dimension_numbers = #tpu.dot_dimension_numbers<[2], [1], [1], [2], [0, 0, 0, 1, 1, 2], [0], [0]>} : vector<1x16x16xbf16>, vector<1x16x64xbf16>, vector<1x16x64xf32> -> vector<1x16x64xf32>
    "tpu.trace_stop"() : () -> ()
    %84 = arith.truncf %83 : vector<1x16x64xf32> to vector<1x16x64xbf16>
    %85 = tpu.concatenate %65, %84 in 2 : vector<1x16x64xbf16>, vector<1x16x64xbf16> -> vector<1x16x128xbf16>
    %86 = vector.shape_cast %85 : vector<1x16x128xbf16> to vector<16x128xbf16>
    %c0_28 = arith.constant 0 : index
    %c0_29 = arith.constant 0 : index
    %c0_30 = arith.constant 0 : index
    %87 = vector.load %arg7[%c0_28, %c0_29, %c0_30] : memref<1x128x128xbf16, #tpu.memory_space<vmem>>, vector<1x128x128xbf16>
    %88 = vector.shape_cast %87 : vector<1x128x128xbf16> to vector<128x128xbf16>
    %cst_31 = arith.constant dense<0.000000e+00> : vector<16x128xf32>
    %89 = tpu.matmul %86, %88, %cst_31 {dimension_numbers = #tpu.dot_dimension_numbers<[1], [0], [0], [1], [0, 0, 1, 1], [], []>} : vector<16x128xbf16>, vector<128x128xbf16>, vector<16x128xf32> -> vector<16x128xf32>
    %c0_32 = arith.constant 0 : index
    %c0_33 = arith.constant 0 : index
    %c0_34 = arith.constant 0 : index
    %90 = vector.load %arg8[%c0_32, %c0_33, %c0_34] : memref<1x1x128xf32, #tpu.memory_space<vmem>>, vector<1x1x128xf32>
    %91 = vector.shape_cast %90 : vector<1x1x128xf32> to vector<1x128xf32>
    %92 = vector.broadcast %91 : vector<1x128xf32> to vector<16x128xf32>
    %93 = arith.addf %89, %92 : vector<16x128xf32>
    %94 = arith.addf %3, %93 : vector<16x128xf32>
    %cst_35 = arith.constant dense<0.000000e+00> : vector<16xf32>
    %95 = vector.multi_reduction <add>, %94, %cst_35 [1] : vector<16x128xf32> to vector<16xf32>
    %96 = vector.shape_cast %95 : vector<16xf32> to vector<16x1xf32>
    %cst_36 = arith.constant 1.280000e+02 : f32
    %97 = vector.broadcast %cst_36 : f32 to vector<16x1xf32>
    %98 = arith.divf %96, %97 : vector<16x1xf32>
    %99 = arith.mulf %94, %94 : vector<16x128xf32>
    %cst_37 = arith.constant dense<0.000000e+00> : vector<16xf32>
    %100 = vector.multi_reduction <add>, %99, %cst_37 [1] : vector<16x128xf32> to vector<16xf32>
    %101 = vector.shape_cast %100 : vector<16xf32> to vector<16x1xf32>
    %cst_38 = arith.constant 1.280000e+02 : f32
    %102 = vector.broadcast %cst_38 : f32 to vector<16x1xf32>
    %103 = arith.divf %101, %102 : vector<16x1xf32>
    %104 = arith.mulf %98, %98 : vector<16x1xf32>
    %105 = arith.subf %103, %104 : vector<16x1xf32>
    %cst_39 = arith.constant 0.000000e+00 : f32
    %106 = vector.broadcast %cst_39 : f32 to vector<16x1xf32>
    %107 = arith.maximumf %105, %106 : vector<16x1xf32>
    %108 = vector.broadcast %98 : vector<16x1xf32> to vector<16x128xf32>
    %109 = arith.subf %94, %108 : vector<16x128xf32>
    %cst_40 = arith.constant 9.99999997E-7 : f32
    %110 = vector.broadcast %cst_40 : f32 to vector<16x1xf32>
    %111 = arith.addf %107, %110 : vector<16x1xf32>
    %112 = math.rsqrt %111 : vector<16x1xf32>
    %113 = vector.broadcast %112 : vector<16x1xf32> to vector<16x128xf32>
    %114 = arith.mulf %109, %113 : vector<16x128xf32>
    %c0_41 = arith.constant 0 : index
    %c0_42 = arith.constant 0 : index
    %c0_43 = arith.constant 0 : index
    %115 = vector.load %arg9[%c0_41, %c0_42, %c0_43] : memref<1x1x128xf32, #tpu.memory_space<vmem>>, vector<1x1x128xf32>
    %116 = vector.shape_cast %115 : vector<1x1x128xf32> to vector<1x128xf32>
    %117 = vector.broadcast %116 : vector<1x128xf32> to vector<16x128xf32>
    %118 = arith.mulf %114, %117 : vector<16x128xf32>
    %c0_44 = arith.constant 0 : index
    %c0_45 = arith.constant 0 : index
    %c0_46 = arith.constant 0 : index
    %119 = vector.load %arg10[%c0_44, %c0_45, %c0_46] : memref<1x1x128xf32, #tpu.memory_space<vmem>>, vector<1x1x128xf32>
    %120 = vector.shape_cast %119 : vector<1x1x128xf32> to vector<1x128xf32>
    %121 = vector.broadcast %120 : vector<1x128xf32> to vector<16x128xf32>
    %122 = arith.addf %118, %121 : vector<16x128xf32>
    %123 = arith.truncf %122 : vector<16x128xf32> to vector<16x128xbf16>
    %c0_47 = arith.constant 0 : index
    %c0_48 = arith.constant 0 : index
    %c0_49 = arith.constant 0 : index
    %124 = vector.load %arg11[%c0_47, %c0_48, %c0_49] : memref<1x128x256xbf16, #tpu.memory_space<vmem>>, vector<1x128x256xbf16>
    %125 = vector.shape_cast %124 : vector<1x128x256xbf16> to vector<128x256xbf16>
    %cst_50 = arith.constant dense<0.000000e+00> : vector<16x256xf32>
    %126 = tpu.matmul %123, %125, %cst_50 {dimension_numbers = #tpu.dot_dimension_numbers<[1], [0], [0], [1], [0, 0, 1, 1], [], []>} : vector<16x128xbf16>, vector<128x256xbf16>, vector<16x256xf32> -> vector<16x256xf32>
    %c0_51 = arith.constant 0 : index
    %c0_52 = arith.constant 0 : index
    %c0_53 = arith.constant 0 : index
    %127 = vector.load %arg12[%c0_51, %c0_52, %c0_53] : memref<1x1x256xf32, #tpu.memory_space<vmem>>, vector<1x1x256xf32>
    %128 = vector.shape_cast %127 : vector<1x1x256xf32> to vector<1x256xf32>
    %129 = vector.broadcast %128 : vector<1x256xf32> to vector<16x256xf32>
    %130 = arith.addf %126, %129 : vector<16x256xf32>
    %cst_54 = arith.constant 5.000000e-01 : f32
    %131 = vector.broadcast %cst_54 : f32 to vector<16x256xf32>
    %132 = arith.mulf %131, %130 : vector<16x256xf32>
    %cst_55 = arith.constant 4.471500e-02 : f32
    %133 = vector.broadcast %cst_55 : f32 to vector<16x256xf32>
    %134 = arith.mulf %133, %130 : vector<16x256xf32>
    %135 = arith.mulf %134, %130 : vector<16x256xf32>
    %136 = arith.mulf %135, %130 : vector<16x256xf32>
    %137 = arith.addf %130, %136 : vector<16x256xf32>
    %cst_56 = arith.constant 0.797884583 : f32
    %138 = vector.broadcast %cst_56 : f32 to vector<16x256xf32>
    %139 = arith.mulf %138, %137 : vector<16x256xf32>
    %140 = math.tanh %139 : vector<16x256xf32>
    %cst_57 = arith.constant 1.000000e+00 : f32
    %141 = vector.broadcast %cst_57 : f32 to vector<16x256xf32>
    %142 = arith.addf %141, %140 : vector<16x256xf32>
    %143 = arith.mulf %132, %142 : vector<16x256xf32>
    %144 = arith.truncf %143 : vector<16x256xf32> to vector<16x256xbf16>
    %c0_58 = arith.constant 0 : index
    %c0_59 = arith.constant 0 : index
    %c0_60 = arith.constant 0 : index
    %145 = vector.load %arg13[%c0_58, %c0_59, %c0_60] : memref<1x256x128xbf16, #tpu.memory_space<vmem>>, vector<1x256x128xbf16>
    %146 = vector.shape_cast %145 : vector<1x256x128xbf16> to vector<256x128xbf16>
    %cst_61 = arith.constant dense<0.000000e+00> : vector<16x128xf32>
    %147 = tpu.matmul %144, %146, %cst_61 {dimension_numbers = #tpu.dot_dimension_numbers<[1], [0], [0], [1], [0, 0, 1, 1], [], []>} : vector<16x256xbf16>, vector<256x128xbf16>, vector<16x128xf32> -> vector<16x128xf32>
    %c0_62 = arith.constant 0 : index
    %c0_63 = arith.constant 0 : index
    %c0_64 = arith.constant 0 : index
    %148 = vector.load %arg14[%c0_62, %c0_63, %c0_64] : memref<1x1x128xf32, #tpu.memory_space<vmem>>, vector<1x1x128xf32>
    %149 = vector.shape_cast %148 : vector<1x1x128xf32> to vector<1x128xf32>
    %150 = vector.broadcast %149 : vector<1x128xf32> to vector<16x128xf32>
    %151 = arith.addf %147, %150 : vector<16x128xf32>
    %152 = arith.addf %94, %151 : vector<16x128xf32>
    %c0_65 = arith.constant 0 : index
    %c0_66 = arith.constant 0 : index
    %153 = vector.load %arg16[%c0_65, %c0_66] : memref<16x128xf32, #tpu.memory_space<vmem>>, vector<16x128xf32>
    tpu.vector_store %arg16[%c0_65, %c0_66], %152 {strides = array<i32>} : memref<16x128xf32, #tpu.memory_space<vmem>>, vector<16x128xf32>,
    %c1_i32 = arith.constant 1 : i32
    %154 = arith.cmpi eq, %arg1, %c1_i32 : i32
    %155 = arith.extui %154 : i1 to i32
    %c0_i32_67 = arith.constant 0 : i32
    %156 = arith.cmpi ne, %155, %c0_i32_67 : i32
    scf.if %156 {
      %c0_68 = arith.constant 0 : index
      %c0_69 = arith.constant 0 : index
      %157 = vector.load %arg15[%c0_68, %c0_69] : memref<16x128xf32, #tpu.memory_space<vmem>>, vector<16x128xf32>
      tpu.vector_store %arg15[%c0_68, %c0_69], %152 {strides = array<i32>} : memref<16x128xf32, #tpu.memory_space<vmem>>, vector<16x128xf32>,
    } else {
    }
    return
  }
  func.func @transform_0(%arg0: i32, %arg1: i32) -> (i32, i32) {
    %c0_i32 = arith.constant 0 : i32
    %c0_i32_0 = arith.constant 0 : i32
    return %arg0, %c0_i32 : i32, i32
  }
  func.func @transform_1(%arg0: i32, %arg1: i32) -> (i32, i32, i32) {
    %c0_i32 = arith.constant 0 : i32
    %c0_i32_0 = arith.constant 0 : i32
    %c0_i32_1 = arith.constant 0 : i32
    return %arg1, %c0_i32, %c0_i32_0 : i32, i32, i32
  }
  func.func @transform_2(%arg0: i32, %arg1: i32) -> (i32, i32, i32) {
    %c0_i32 = arith.constant 0 : i32
    %c0_i32_0 = arith.constant 0 : i32
    %c0_i32_1 = arith.constant 0 : i32
    return %arg1, %c0_i32, %c0_i32_0 : i32, i32, i32
  }
  func.func @transform_3(%arg0: i32, %arg1: i32) -> (i32, i32, i32) {
    %c0_i32 = arith.constant 0 : i32
    %c0_i32_0 = arith.constant 0 : i32
    %c0_i32_1 = arith.constant 0 : i32
    return %arg1, %c0_i32, %c0_i32_0 : i32, i32, i32
  }
  func.func @transform_4(%arg0: i32, %arg1: i32) -> (i32, i32, i32) {
    %c0_i32 = arith.constant 0 : i32
    %c0_i32_0 = arith.constant 0 : i32
    %c0_i32_1 = arith.constant 0 : i32
    return %arg1, %c0_i32, %c0_i32_0 : i32, i32, i32
  }
  func.func @transform_5(%arg0: i32, %arg1: i32) -> (i32, i32, i32) {
    %c0_i32 = arith.constant 0 : i32
    %c0_i32_0 = arith.constant 0 : i32
    %c0_i32_1 = arith.constant 0 : i32
    return %arg1, %c0_i32, %c0_i32_0 : i32, i32, i32
  }
  func.func @transform_6(%arg0: i32, %arg1: i32) -> (i32, i32, i32) {
    %c0_i32 = arith.constant 0 : i32
    %c0_i32_0 = arith.constant 0 : i32
    %c0_i32_1 = arith.constant 0 : i32
    return %arg1, %c0_i32, %c0_i32_0 : i32, i32, i32
  }
  func.func @transform_7(%arg0: i32, %arg1: i32) -> (i32, i32, i32) {
    %c0_i32 = arith.constant 0 : i32
    %c0_i32_0 = arith.constant 0 : i32
    %c0_i32_1 = arith.constant 0 : i32
    return %arg1, %c0_i32, %c0_i32_0 : i32, i32, i32
  }
  func.func @transform_8(%arg0: i32, %arg1: i32) -> (i32, i32, i32) {
    %c0_i32 = arith.constant 0 : i32
    %c0_i32_0 = arith.constant 0 : i32
    %c0_i32_1 = arith.constant 0 : i32
    return %arg1, %c0_i32, %c0_i32_0 : i32, i32, i32
  }
  func.func @transform_9(%arg0: i32, %arg1: i32) -> (i32, i32, i32) {
    %c0_i32 = arith.constant 0 : i32
    %c0_i32_0 = arith.constant 0 : i32
    %c0_i32_1 = arith.constant 0 : i32
    return %arg1, %c0_i32, %c0_i32_0 : i32, i32, i32
  }
  func.func @transform_10(%arg0: i32, %arg1: i32) -> (i32, i32, i32) {
    %c0_i32 = arith.constant 0 : i32
    %c0_i32_0 = arith.constant 0 : i32
    %c0_i32_1 = arith.constant 0 : i32
    return %arg1, %c0_i32, %c0_i32_0 : i32, i32, i32
  }
  func.func @transform_11(%arg0: i32, %arg1: i32) -> (i32, i32, i32) {
    %c0_i32 = arith.constant 0 : i32
    %c0_i32_0 = arith.constant 0 : i32
    %c0_i32_1 = arith.constant 0 : i32
    return %arg1, %c0_i32, %c0_i32_0 : i32, i32, i32
  }
  func.func @transform_12(%arg0: i32, %arg1: i32) -> (i32, i32, i32) {
    %c0_i32 = arith.constant 0 : i32
    %c0_i32_0 = arith.constant 0 : i32
    %c0_i32_1 = arith.constant 0 : i32
    return %arg1, %c0_i32, %c0_i32_0 : i32, i32, i32
  }
  func.func @transform_13(%arg0: i32, %arg1: i32) -> (i32, i32) {
    %c0_i32 = arith.constant 0 : i32
    %c0_i32_0 = arith.constant 0 : i32
    return %arg0, %c0_i32 : i32, i32
  }
}

</mosaic_0001>

<llo_original>
// kernel: tpu_custom_call.1
$region0: #{tpu_custom_call.1}
  #allocation0 [shape = 'u32[]', space=smem, size = 0x4, offset = 0x4, fixed_abs, tag = 'smem constant byte address 0x4 - core index']
  #allocation1 [shape = 'u32[72,128]{1,0:T(1,128)}', space=vmem, size = 0x9000, scoped, tag = 'internal scratch']
  #allocation2 [shape = 'f32[16,128]{1,0:T(8,128)}', space=vmem, size = 0x2000, scoped, tag = 'scratch operand']
  %s0 = inlined_call_operand.hbm [shape: f32[32,128], index: 0, kind: input, shape index: {}]
  %s1 = inlined_call_operand.vmem [shape: f32[2,1,128], index: 1, kind: input, shape index: {}]
  %s2 = inlined_call_operand.vmem [shape: f32[2,1,128], index: 2, kind: input, shape index: {}]
  %s3 = inlined_call_operand.hbm [shape: bf16[2,128,384], index: 3, kind: input, shape index: {}]
  %s4 = inlined_call_operand.vmem [shape: bf16[2,1,384], index: 4, kind: input, shape index: {}]
  %s5 = inlined_call_operand.hbm [shape: bf16[2,128,128], index: 5, kind: input, shape index: {}]
  %s6 = inlined_call_operand.vmem [shape: f32[2,1,128], index: 6, kind: input, shape index: {}]
  %s7 = inlined_call_operand.hbm [shape: f32[2,1,128], index: 7, kind: input, shape index: {}]
  %s8 = inlined_call_operand.vmem [shape: f32[2,1,128], index: 8, kind: input, shape index: {}]
  %s9 = inlined_call_operand.hbm [shape: bf16[2,128,256], index: 9, kind: input, shape index: {}]
  %s10 = inlined_call_operand.vmem [shape: f32[2,1,256], index: 10, kind: input, shape index: {}]
  %s11 = inlined_call_operand.hbm [shape: bf16[2,256,128], index: 11, kind: input, shape index: {}]
  %s12 = inlined_call_operand.vmem [shape: f32[2,1,128], index: 12, kind: input, shape index: {}]
  %s13 = inlined_call_operand.hbm [shape: f32[32,128], index: 13, kind: output, shape index: {}]
  %s14 = sld [smem:[#allocation0]]
  $region117: #{tpu_custom_call.1} parent=0
    _
  %s16 = ssub.s32 1, %s14
  %s17 = scalar_select 0, %s16, %s14
  $region1: #{tpu_custom_call.1} parent=0
    #allocation3 [shape = 'u8[16384]{0}', space=vmem, size = 0x4000, scoped, tag = 'input window, operand 0']
    #allocation4 [shape = 's32[2]{0}', space=sflag, size = 0x8, scoped, tag = 'scoped memory for tpu_custom_call.1']
    #allocation5 [shape = 's32[2]{0}', space=sflag, size = 0x8, scoped, tag = 'scoped memory for tpu_custom_call.1']
    #allocation6 [shape = 'u8[196608]{0}', space=vmem, size = 0x30000, scoped, tag = 'input window, operand 3']
    #allocation7 [shape = 's32[2]{0}', space=sflag, size = 0x8, scoped, tag = 'scoped memory for tpu_custom_call.1']
    #allocation8 [shape = 'u8[65536]{0}', space=vmem, size = 0x10000, scoped, tag = 'input window, operand 5']
    #allocation9 [shape = 'u8[1024]{0}', space=vmem, size = 0x400, scoped, tag = 'input window, operand 7']
    #allocation10 [shape = 's32[2]{0}', space=sflag, size = 0x8, scoped, tag = 'scoped memory for tpu_custom_call.1']
    #allocation11 [shape = 'u8[131072]{0}', space=vmem, size = 0x20000, scoped, tag = 'input window, operand 9']
    #allocation12 [shape = 'u8[131072]{0}', space=vmem, size = 0x20000, scoped, tag = 'input window, operand 11']
    #allocation13 [shape = 's32[2]{0}', space=sflag, size = 0x8, scoped, tag = 'scoped memory for tpu_custom_call.1']
    #allocation14 [shape = 'u8[16384]{0}', space=vmem, size = 0x4000, scoped, tag = 'output window, operand 0']
    %18 = vsyncpa [#allocation4], 0
    %s19 = scalar_lea.sflag [#allocation4], 1
    %20 = vsyncpa %s19, 0
    %21 = vsyncpa [#allocation7], 0
    %s22 = scalar_lea.sflag [#allocation7], 1
    %23 = vsyncpa %s22, 0
    %24 = vsyncpa [#allocation10], 0
    %s25 = scalar_lea.sflag [#allocation10], 1
    %26 = vsyncpa %s25, 0
    %27 = vsyncpa [#allocation13], 0
    %s28 = scalar_lea.sflag [#allocation13], 1
    %29 = vsyncpa %s28, 0
    %30 = vsyncpa [#allocation5], 0
    %s31 = scalar_lea.sflag [#allocation5], 1
    %32 = vsyncpa %s31, 0
    loop: start=0, step=1, limit=6
    $region2: #{tpu_custom_call.1} parent=1 // loop_pre_header
      _
    $region3: #{tpu_custom_call.1} parent=1 // loop_header
      %s34 = sphi 0, %s38
      %p35 = scmp.ge.s32.totalorder %s34, 6
      %s41 = sphi 0, %s53
      %s42 = sphi 0, %s49
      %s43 = sphi 0, %s41
      %s44 = sphi 0, %s42
      %s45 = sphi 0, %s43
      %s46 = sphi 0, %s44
      %s56 = sphi 0, %s58
      %s59 = sphi 0, %s56
      %s60 = sphi 0, %s59
      %s76 = sphi 0, %s60
      %s82 = sphi 0, %s84
      %s85 = sphi 0, %s82
      %s86 = sphi 0, %s85
      %s102 = sphi 0, %s86
      %s108 = sphi 0, %s110
      %s111 = sphi 0, %s108
      %s112 = sphi 0, %s111
      %s128 = sphi 0, %s112
      %s134 = sphi 0, %s136
      %s137 = sphi 0, %s134
      %s138 = sphi 0, %s137
      %s154 = sphi 0, %s138
      %s160 = sphi 0, %s162
      %s163 = sphi 0, %s160
      %s164 = sphi 0, %s163
      %s180 = sphi 0, %s164
      %s186 = sphi 0, %s188
      %s189 = sphi 0, %s186
      %s190 = sphi 0, %s189
      %s206 = sphi 0, %s190
      %s212 = sphi 0, %s214
      %s215 = sphi 0, %s212
      %s216 = sphi 0, %s215
      %s232 = sphi 0, %s216
      %s238 = sphi 0, %s240
      %s241 = sphi 0, %s238
      %s242 = sphi 0, %s241
      %s258 = sphi 0, %s242
      %s264 = sphi 0, %s266
      %s267 = sphi 0, %s264
      %s268 = sphi 0, %s267
      %s284 = sphi 0, %s268
      %s290 = sphi 0, %s292
      %s293 = sphi 0, %s290
      %s294 = sphi 0, %s293
      %s310 = sphi 0, %s294
      %s316 = sphi 0, %s318
      %s319 = sphi 0, %s316
      %s320 = sphi 0, %s319
      %s336 = sphi 0, %s320
      %s342 = sphi 0, %s344
      %s345 = sphi 0, %s342
      %s346 = sphi 0, %s345
      %s362 = sphi 0, %s346
      %s368 = sphi 0, %s370
      %s371 = sphi 0, %s368
      %s372 = sphi 0, %s371
      %s388 = sphi 0, %s372
      %s394 = sphi 0, %s396
      %s397 = sphi 0, %s394
      %s398 = sphi 0, %s397
      %s414 = sphi 0, %s398
    $region4: #{tpu_custom_call.1} parent=1 // loop_header_branch
      %37 = sbr.rel (%p35) target = $region8
    $region5: #{tpu_custom_call.1} parent=1 // loop_body
      %s39 = ssub.s32 %s34, 1
      %s40 = ssub.s32 %s34, 2
      %s47 = sadd.s32 1, %s42
      %p48 = scmp.ge.s32.totalorder %s47, 2
      %s49 = scalar_select %p48, 0, %s47
      %s50 = sadd.s32 1, %s41
      %s51 = scalar_select %p48, %s50, %s41
      %p52 = scmp.ge.s32.totalorder %s51, 2
      %s53 = scalar_select %p52, 0, %s51
      %s54 = ssub.s32 %s41, %s53
      %p55 = scmp.eq.s32.totalorder %s54, 0
      %s57 = sadd.s32 %s56, 1
      %s58 = scalar_select %p55, %s56, %s57
      %p61 = pneg %p55
      %p62 = scmp.eq.s32.totalorder %s34, 3
      %p63 = por %p61, %p62
      %p64 = scmp.ne.s32.totalorder %s56, %s59
      %p65 = scmp.eq.s32.totalorder %s34, 0
      %p66 = por %p64, %p65
      %p67 = scmp.ne.s32.totalorder %s56, %s59
      %p68 = scmp.eq.s32.totalorder %s39, 3
      %p69 = por %p67, %p68
      %p70 = scmp.ne.s32.totalorder %s59, %s60
      %p71 = scmp.eq.s32.totalorder %s39, 0
      %p72 = por %p70, %p71
      %p73 = scmp.ne.s32.totalorder %s59, %s60
      %p74 = scmp.eq.s32.totalorder %s40, 3
      %p75 = por %p73, %p74
      %p77 = scmp.ne.s32.totalorder %s60, %s76
      %p78 = scmp.eq.s32.totalorder %s40, 0
      %p79 = por %p77, %p78
      %s80 = ssub.s32 %s42, %s49
      %p81 = scmp.eq.s32.totalorder %s80, 0
      %s83 = sadd.s32 %s82, 1
      %s84 = scalar_select %p81, %s82, %s83
      %p87 = pneg %p81
      %p88 = scmp.eq.s32.totalorder %s34, 3
      %p89 = por %p87, %p88
      %p90 = scmp.ne.s32.totalorder %s82, %s85
      %p91 = scmp.eq.s32.totalorder %s34, 0
      %p92 = por %p90, %p91
      %p93 = scmp.ne.s32.totalorder %s82, %s85
      %p94 = scmp.eq.s32.totalorder %s39, 3
      %p95 = por %p93, %p94
      %p96 = scmp.ne.s32.totalorder %s85, %s86
      %p97 = scmp.eq.s32.totalorder %s39, 0
      %p98 = por %p96, %p97
      %p99 = scmp.ne.s32.totalorder %s85, %s86
      %p100 = scmp.eq.s32.totalorder %s40, 3
      %p101 = por %p99, %p100
      %p103 = scmp.ne.s32.totalorder %s86, %s102
      %p104 = scmp.eq.s32.totalorder %s40, 0
      %p105 = por %p103, %p104
      %s106 = ssub.s32 %s42, %s49
      %p107 = scmp.eq.s32.totalorder %s106, 0
      %s109 = sadd.s32 %s108, 1
      %s110 = scalar_select %p107, %s108, %s109
      %p113 = pneg %p107
      %p114 = scmp.eq.s32.totalorder %s34, 3
      %p115 = por %p113, %p114
      %p116 = scmp.ne.s32.totalorder %s108, %s111
      %p117 = scmp.eq.s32.totalorder %s34, 0
      %p118 = por %p116, %p117
      %p119 = scmp.ne.s32.totalorder %s108, %s111
      %p120 = scmp.eq.s32.totalorder %s39, 3
      %p121 = por %p119, %p120
      %p122 = scmp.ne.s32.totalorder %s111, %s112
      %p123 = scmp.eq.s32.totalorder %s39, 0
      %p124 = por %p122, %p123
      %p125 = scmp.ne.s32.totalorder %s111, %s112
      %p126 = scmp.eq.s32.totalorder %s40, 3
      %p127 = por %p125, %p126
      %p129 = scmp.ne.s32.totalorder %s112, %s128
      %p130 = scmp.eq.s32.totalorder %s40, 0
      %p131 = por %p129, %p130
      %s132 = ssub.s32 %s42, %s49
      %p133 = scmp.eq.s32.totalorder %s132, 0
      %s135 = sadd.s32 %s134, 1
      %s136 = scalar_select %p133, %s134, %s135
      %p139 = pneg %p133
      %p140 = scmp.eq.s32.totalorder %s34, 3
      %p141 = por %p139, %p140
      %p142 = scmp.ne.s32.totalorder %s134, %s137
      %p143 = scmp.eq.s32.totalorder %s34, 0
      %p144 = por %p142, %p143
      %p145 = scmp.ne.s32.totalorder %s134, %s137
      %p146 = scmp.eq.s32.totalorder %s39, 3
      %p147 = por %p145, %p146
      %p148 = scmp.ne.s32.totalorder %s137, %s138
      %p149 = scmp.eq.s32.totalorder %s39, 0
      %p150 = por %p148, %p149
      %p151 = scmp.ne.s32.totalorder %s137, %s138
      %p152 = scmp.eq.s32.totalorder %s40, 3
      %p153 = por %p151, %p152
      %p155 = scmp.ne.s32.totalorder %s138, %s154
      %p156 = scmp.eq.s32.totalorder %s40, 0
      %p157 = por %p155, %p156
      %s158 = ssub.s32 %s42, %s49
      %p159 = scmp.eq.s32.totalorder %s158, 0
      %s161 = sadd.s32 %s160, 1
      %s162 = scalar_select %p159, %s160, %s161
      %p165 = pneg %p159
      %p166 = scmp.eq.s32.totalorder %s34, 3
      %p167 = por %p165, %p166
      %p168 = scmp.ne.s32.totalorder %s160, %s163
      %p169 = scmp.eq.s32.totalorder %s34, 0
      %p170 = por %p168, %p169
      %p171 = scmp.ne.s32.totalorder %s160, %s163
      %p172 = scmp.eq.s32.totalorder %s39, 3
      %p173 = por %p171, %p172
      %p174 = scmp.ne.s32.totalorder %s163, %s164
      %p175 = scmp.eq.s32.totalorder %s39, 0
      %p176 = por %p174, %p175
      %p177 = scmp.ne.s32.totalorder %s163, %s164
      %p178 = scmp.eq.s32.totalorder %s40, 3
      %p179 = por %p177, %p178
      %p181 = scmp.ne.s32.totalorder %s164, %s180
      %p182 = scmp.eq.s32.totalorder %s40, 0
      %p183 = por %p181, %p182
      %s184 = ssub.s32 %s42, %s49
      %p185 = scmp.eq.s32.totalorder %s184, 0
      %s187 = sadd.s32 %s186, 1
      %s188 = scalar_select %p185, %s186, %s187
      %p191 = pneg %p185
      %p192 = scmp.eq.s32.totalorder %s34, 3
      %p193 = por %p191, %p192
      %p194 = scmp.ne.s32.totalorder %s186, %s189
      %p195 = scmp.eq.s32.totalorder %s34, 0
      %p196 = por %p194, %p195
      %p197 = scmp.ne.s32.totalorder %s186, %s189
      %p198 = scmp.eq.s32.totalorder %s39, 3
      %p199 = por %p197, %p198
      %p200 = scmp.ne.s32.totalorder %s189, %s190
      %p201 = scmp.eq.s32.totalorder %s39, 0
      %p202 = por %p200, %p201
      %p203 = scmp.ne.s32.totalorder %s189, %s190
      %p204 = scmp.eq.s32.totalorder %s40, 3
      %p205 = por %p203, %p204
      %p207 = scmp.ne.s32.totalorder %s190, %s206
      %p208 = scmp.eq.s32.totalorder %s40, 0
      %p209 = por %p207, %p208
      %s210 = ssub.s32 %s42, %s49
      %p211 = scmp.eq.s32.totalorder %s210, 0
      %s213 = sadd.s32 %s212, 1
      %s214 = scalar_select %p211, %s212, %s213
      %p217 = pneg %p211
      %p218 = scmp.eq.s32.totalorder %s34, 3
      %p219 = por %p217, %p218
      %p220 = scmp.ne.s32.totalorder %s212, %s215
      %p221 = scmp.eq.s32.totalorder %s34, 0
      %p222 = por %p220, %p221
      %p223 = scmp.ne.s32.totalorder %s212, %s215
      %p224 = scmp.eq.s32.totalorder %s39, 3
      %p225 = por %p223, %p224
      %p226 = scmp.ne.s32.totalorder %s215, %s216
      %p227 = scmp.eq.s32.totalorder %s39, 0
      %p228 = por %p226, %p227
      %p229 = scmp.ne.s32.totalorder %s215, %s216
      %p230 = scmp.eq.s32.totalorder %s40, 3
      %p231 = por %p229, %p230
      %p233 = scmp.ne.s32.totalorder %s216, %s232
      %p234 = scmp.eq.s32.totalorder %s40, 0
      %p235 = por %p233, %p234
      %s236 = ssub.s32 %s42, %s49
      %p237 = scmp.eq.s32.totalorder %s236, 0
      %s239 = sadd.s32 %s238, 1
      %s240 = scalar_select %p237, %s238, %s239
      %p243 = pneg %p237
      %p244 = scmp.eq.s32.totalorder %s34, 3
      %p245 = por %p243, %p244
      %p246 = scmp.ne.s32.totalorder %s238, %s241
      %p247 = scmp.eq.s32.totalorder %s34, 0
      %p248 = por %p246, %p247
      %p249 = scmp.ne.s32.totalorder %s238, %s241
      %p250 = scmp.eq.s32.totalorder %s39, 3
      %p251 = por %p249, %p250
      %p252 = scmp.ne.s32.totalorder %s241, %s242
      %p253 = scmp.eq.s32.totalorder %s39, 0
      %p254 = por %p252, %p253
      %p255 = scmp.ne.s32.totalorder %s241, %s242
      %p256 = scmp.eq.s32.totalorder %s40, 3
      %p257 = por %p255, %p256
      %p259 = scmp.ne.s32.totalorder %s242, %s258
      %p260 = scmp.eq.s32.totalorder %s40, 0
      %p261 = por %p259, %p260
      %s262 = ssub.s32 %s42, %s49
      %p263 = scmp.eq.s32.totalorder %s262, 0
      %s265 = sadd.s32 %s264, 1
      %s266 = scalar_select %p263, %s264, %s265
      %p269 = pneg %p263
      %p270 = scmp.eq.s32.totalorder %s34, 3
      %p271 = por %p269, %p270
      %p272 = scmp.ne.s32.totalorder %s264, %s267
      %p273 = scmp.eq.s32.totalorder %s34, 0
      %p274 = por %p272, %p273
      %p275 = scmp.ne.s32.totalorder %s264, %s267
      %p276 = scmp.eq.s32.totalorder %s39, 3
      %p277 = por %p275, %p276
      %p278 = scmp.ne.s32.totalorder %s267, %s268
      %p279 = scmp.eq.s32.totalorder %s39, 0
      %p280 = por %p278, %p279
      %p281 = scmp.ne.s32.totalorder %s267, %s268
      %p282 = scmp.eq.s32.totalorder %s40, 3
      %p283 = por %p281, %p282
      %p285 = scmp.ne.s32.totalorder %s268, %s284
      %p286 = scmp.eq.s32.totalorder %s40, 0
      %p287 = por %p285, %p286
      %s288 = ssub.s32 %s42, %s49
      %p289 = scmp.eq.s32.totalorder %s288, 0
      %s291 = sadd.s32 %s290, 1
      %s292 = scalar_select %p289, %s290, %s291
      %p295 = pneg %p289
      %p296 = scmp.eq.s32.totalorder %s34, 3
      %p297 = por %p295, %p296
      %p298 = scmp.ne.s32.totalorder %s290, %s293
      %p299 = scmp.eq.s32.totalorder %s34, 0
      %p300 = por %p298, %p299
      %p301 = scmp.ne.s32.totalorder %s290, %s293
      %p302 = scmp.eq.s32.totalorder %s39, 3
      %p303 = por %p301, %p302
      %p304 = scmp.ne.s32.totalorder %s293, %s294
      %p305 = scmp.eq.s32.totalorder %s39, 0
      %p306 = por %p304, %p305
      %p307 = scmp.ne.s32.totalorder %s293, %s294
      %p308 = scmp.eq.s32.totalorder %s40, 3
      %p309 = por %p307, %p308
      %p311 = scmp.ne.s32.totalorder %s294, %s310
      %p312 = scmp.eq.s32.totalorder %s40, 0
      %p313 = por %p311, %p312
      %s314 = ssub.s32 %s42, %s49
      %p315 = scmp.eq.s32.totalorder %s314, 0
      %s317 = sadd.s32 %s316, 1
      %s318 = scalar_select %p315, %s316, %s317
      %p321 = pneg %p315
      %p322 = scmp.eq.s32.totalorder %s34, 3
      %p323 = por %p321, %p322
      %p324 = scmp.ne.s32.totalorder %s316, %s319
      %p325 = scmp.eq.s32.totalorder %s34, 0
      %p326 = por %p324, %p325
      %p327 = scmp.ne.s32.totalorder %s316, %s319
      %p328 = scmp.eq.s32.totalorder %s39, 3
      %p329 = por %p327, %p328
      %p330 = scmp.ne.s32.totalorder %s319, %s320
      %p331 = scmp.eq.s32.totalorder %s39, 0
      %p332 = por %p330, %p331
      %p333 = scmp.ne.s32.totalorder %s319, %s320
      %p334 = scmp.eq.s32.totalorder %s40, 3
      %p335 = por %p333, %p334
      %p337 = scmp.ne.s32.totalorder %s320, %s336
      %p338 = scmp.eq.s32.totalorder %s40, 0
      %p339 = por %p337, %p338
      %s340 = ssub.s32 %s42, %s49
      %p341 = scmp.eq.s32.totalorder %s340, 0
      %s343 = sadd.s32 %s342, 1
      %s344 = scalar_select %p341, %s342, %s343
      %p347 = pneg %p341
      %p348 = scmp.eq.s32.totalorder %s34, 3
      %p349 = por %p347, %p348
      %p350 = scmp.ne.s32.totalorder %s342, %s345
      %p351 = scmp.eq.s32.totalorder %s34, 0
      %p352 = por %p350, %p351
      %p353 = scmp.ne.s32.totalorder %s342, %s345
      %p354 = scmp.eq.s32.totalorder %s39, 3
      %p355 = por %p353, %p354
      %p356 = scmp.ne.s32.totalorder %s345, %s346
      %p357 = scmp.eq.s32.totalorder %s39, 0
      %p358 = por %p356, %p357
      %p359 = scmp.ne.s32.totalorder %s345, %s346
      %p360 = scmp.eq.s32.totalorder %s40, 3
      %p361 = por %p359, %p360
      %p363 = scmp.ne.s32.totalorder %s346, %s362
      %p364 = scmp.eq.s32.totalorder %s40, 0
      %p365 = por %p363, %p364
      %s366 = ssub.s32 %s42, %s49
      %p367 = scmp.eq.s32.totalorder %s366, 0
      %s369 = sadd.s32 %s368, 1
      %s370 = scalar_select %p367, %s368, %s369
      %p373 = pneg %p367
      %p374 = scmp.eq.s32.totalorder %s34, 3
      %p375 = por %p373, %p374
      %p376 = scmp.ne.s32.totalorder %s368, %s371
      %p377 = scmp.eq.s32.totalorder %s34, 0
      %p378 = por %p376, %p377
      %p379 = scmp.ne.s32.totalorder %s368, %s371
      %p380 = scmp.eq.s32.totalorder %s39, 3
      %p381 = por %p379, %p380
      %p382 = scmp.ne.s32.totalorder %s371, %s372
      %p383 = scmp.eq.s32.totalorder %s39, 0
      %p384 = por %p382, %p383
      %p385 = scmp.ne.s32.totalorder %s371, %s372
      %p386 = scmp.eq.s32.totalorder %s40, 3
      %p387 = por %p385, %p386
      %p389 = scmp.ne.s32.totalorder %s372, %s388
      %p390 = scmp.eq.s32.totalorder %s40, 0
      %p391 = por %p389, %p390
      %s392 = ssub.s32 %s41, %s53
      %p393 = scmp.eq.s32.totalorder %s392, 0
      %s395 = sadd.s32 %s394, 1
      %s396 = scalar_select %p393, %s394, %s395
      %p399 = pneg %p393
      %p400 = scmp.eq.s32.totalorder %s34, 3
      %p401 = por %p399, %p400
      %p402 = scmp.ne.s32.totalorder %s394, %s397
      %p403 = scmp.eq.s32.totalorder %s34, 0
      %p404 = por %p402, %p403
      %p405 = scmp.ne.s32.totalorder %s394, %s397
      %p406 = scmp.eq.s32.totalorder %s39, 3
      %p407 = por %p405, %p406
      %p408 = scmp.ne.s32.totalorder %s397, %s398
      %p409 = scmp.eq.s32.totalorder %s39, 0
      %p410 = por %p408, %p409
      %p411 = scmp.ne.s32.totalorder %s397, %s398
      %p412 = scmp.eq.s32.totalorder %s40, 3
      %p413 = por %p411, %p412
      %p415 = scmp.ne.s32.totalorder %s398, %s414
      %p416 = scmp.eq.s32.totalorder %s40, 0
      %p417 = por %p415, %p416
      %p418 = scmp.le.s32.totalorder 1, %s34
      %p419 = scmp.lt.s32.totalorder %s34, 5
      %p420 = pnand %p418, %p419
      %p421 = pneg %p420
      // Predicated region
      $region9: #{tpu_custom_call.1} parent=5 // pred_check
        _
      $region10: #{tpu_custom_call.1} parent=5 // pred_check_branch
        %423 = sbr.rel (%p420) target = $region12
      $region11: #{tpu_custom_call.1} parent=5 // pred_region
        %s424 = ssub.s32 %s34, 1
      $region12: #{tpu_custom_call.1} parent=5 // pred_fallthru
        _
      %p425 = scmp.lt.s32.totalorder %s34, 4
      // Predicated region
      $region13: #{tpu_custom_call.1} parent=5 // pred_check
        %p426 = pneg %p425
      $region14: #{tpu_custom_call.1} parent=5 // pred_check_branch
        %428 = sbr.rel (%p426) target = $region16
      $region15: #{tpu_custom_call.1} parent=5 // pred_region
        // Predicated region
        $region17: #{tpu_custom_call.1} parent=15 // pred_check
          %p429 = pneg %p66
        $region18: #{tpu_custom_call.1} parent=15 // pred_check_branch
          %431 = sbr.rel (%p429) target = $region20
        $region19: #{tpu_custom_call.1} parent=15 // pred_region
          %s432 = sand.u32 %s56, 1
          %s433 = scalar_lea.sflag [#allocation4], %s432
          %s434 = sand.u32 %s56, 1
          %s435 = smul.addr %s434, 16
          %s436 = scalar_lea.vmem [#allocation3], %s435
          %s437 = smul.u32 2, %s41
          %439 = vsyncadd %s433, 0
          %s440 = smul.addr %s437, 8
          %s441 = scalar_lea.hbm %s0, %s440
          %s442 = sshll.u32 %s441, 4
          %s443 = int_to_ptr.hbm [resolvable:$true] %s442
          %s444 = sshll.u32 %s436, 4
          %s445 = int_to_ptr.vmem [resolvable:$true] %s444
          %450 = dma.hbm_to_vmem [thread:$0]  %s443, 256, %s445, %s433, 128, 128, 8
        $region20: #{tpu_custom_call.1} parent=15 // pred_fallthru
          _
        // Predicated region
        $region21: #{tpu_custom_call.1} parent=15 // pred_check
          %p451 = pneg %p92
        $region22: #{tpu_custom_call.1} parent=15 // pred_check_branch
          %453 = sbr.rel (%p451) target = $region24
        $region23: #{tpu_custom_call.1} parent=15 // pred_region
          %p454 = scmp.lt.s32.totalorder %s42, 1
          %s455 = scalar_select %p454, %s42, 1
          %s456 = scalar_lea.vmem %s1, %s455
        $region24: #{tpu_custom_call.1} parent=15 // pred_fallthru
          _
        // Predicated region
        $region25: #{tpu_custom_call.1} parent=15 // pred_check
          %p457 = pneg %p118
        $region26: #{tpu_custom_call.1} parent=15 // pred_check_branch
          %459 = sbr.rel (%p457) target = $region28
        $region27: #{tpu_custom_call.1} parent=15 // pred_region
          %p460 = scmp.lt.s32.totalorder %s42, 1
          %s461 = scalar_select %p460, %s42, 1
          %s462 = scalar_lea.vmem %s2, %s461
        $region28: #{tpu_custom_call.1} parent=15 // pred_fallthru
          _
        // Predicated region
        $region29: #{tpu_custom_call.1} parent=15 // pred_check
          %p463 = pneg %p144
        $region30: #{tpu_custom_call.1} parent=15 // pred_check_branch
          %465 = sbr.rel (%p463) target = $region32
        $region31: #{tpu_custom_call.1} parent=15 // pred_region
          %s466 = sand.u32 %s34, 1
          %s467 = scalar_lea.sflag [#allocation7], %s466
          %s468 = sand.u32 %s134, 1
          %s469 = smul.addr %s468, 192
          %s470 = scalar_lea.vmem [#allocation6], %s469
          %472 = vsyncadd %s467, 0
          %s473 = smul.addr %s42, 48
          %s474 = smul.addr %s473, 4
          %s475 = scalar_lea.hbm %s3, %s474
          %s476 = sshll.u32 %s475, 4
          %s477 = int_to_ptr.hbm [resolvable:$true] %s476
          %s478 = sshll.u32 %s470, 4
          %s479 = int_to_ptr.vmem [resolvable:$true] %s478
          %484 = dma.hbm_to_vmem [thread:$0]  %s477, 3072, %s479, %s467, 192, 192, 12
        $region32: #{tpu_custom_call.1} parent=15 // pred_fallthru
          _
        // Predicated region
        $region33: #{tpu_custom_call.1} parent=15 // pred_check
          %p485 = pneg %p170
        $region34: #{tpu_custom_call.1} parent=15 // pred_check_branch
          %487 = sbr.rel (%p485) target = $region36
        $region35: #{tpu_custom_call.1} parent=15 // pred_region
          %p488 = scmp.lt.s32.totalorder %s42, 1
          %s489 = scalar_select %p488, %s42, 1
          %s490 = smul.addr %s489, 3
          %s491 = scalar_lea.vmem %s4, %s490
        $region36: #{tpu_custom_call.1} parent=15 // pred_fallthru
          _
        // Predicated region
        $region37: #{tpu_custom_call.1} parent=15 // pred_check
          %p492 = pneg %p196
        $region38: #{tpu_custom_call.1} parent=15 // pred_check_branch
          %494 = sbr.rel (%p492) target = $region40
        $region39: #{tpu_custom_call.1} parent=15 // pred_region
          %s495 = sand.u32 %s34, 1
          %s496 = scalar_lea.sflag [#allocation7], %s495
          %s497 = sand.u32 %s186, 1
          %s498 = smul.addr %s497, 64
          %s499 = scalar_lea.vmem [#allocation8], %s498
          %501 = vsyncadd %s496, 0
          %s502 = smul.addr %s42, 16
          %s503 = smul.addr %s502, 4
          %s504 = scalar_lea.hbm %s5, %s503
          %s505 = sshll.u32 %s504, 4
          %s506 = int_to_ptr.hbm [resolvable:$true] %s505
          %s507 = sshll.u32 %s499, 4
          %s508 = int_to_ptr.vmem [resolvable:$true] %s507
          %513 = dma.hbm_to_vmem [thread:$0]  %s506, 1024, %s508, %s496, 64, 64, 4
        $region40: #{tpu_custom_call.1} parent=15 // pred_fallthru
          _
        // Predicated region
        $region41: #{tpu_custom_call.1} parent=15 // pred_check
          %p514 = pneg %p222
        $region42: #{tpu_custom_call.1} parent=15 // pred_check_branch
          %516 = sbr.rel (%p514) target = $region44
        $region43: #{tpu_custom_call.1} parent=15 // pred_region
          %p517 = scmp.lt.s32.totalorder %s42, 1
          %s518 = scalar_select %p517, %s42, 1
          %s519 = scalar_lea.vmem %s6, %s518
        $region44: #{tpu_custom_call.1} parent=15 // pred_fallthru
          _
        // Predicated region
        $region45: #{tpu_custom_call.1} parent=15 // pred_check
          %p520 = pneg %p248
        $region46: #{tpu_custom_call.1} parent=15 // pred_check_branch
          %522 = sbr.rel (%p520) target = $region48
        $region47: #{tpu_custom_call.1} parent=15 // pred_region
          %s523 = sand.u32 %s34, 1
          %s524 = scalar_lea.sflag [#allocation10], %s523
          %s525 = sand.u32 %s238, 1
          %s526 = scalar_lea.vmem [#allocation9], %s525
          %528 = vsyncadd %s524, 0
          %s529 = scalar_lea.hbm %s7, %s42
          %s531 = sshll.u32 %s529, 4
          %s532 = int_to_ptr.hbm [resolvable:$true] %s531
          %s533 = sshll.u32 %s526, 4
          %s534 = int_to_ptr.vmem [resolvable:$true] %s533
          %536 = dma.hbm_to_vmem [thread:$0]  %s532, 16, %s534, %s524
        $region48: #{tpu_custom_call.1} parent=15 // pred_fallthru
          _
        // Predicated region
        $region49: #{tpu_custom_call.1} parent=15 // pred_check
          %p537 = pneg %p274
        $region50: #{tpu_custom_call.1} parent=15 // pred_check_branch
          %539 = sbr.rel (%p537) target = $region52
        $region51: #{tpu_custom_call.1} parent=15 // pred_region
          %p540 = scmp.lt.s32.totalorder %s42, 1
          %s541 = scalar_select %p540, %s42, 1
          %s542 = scalar_lea.vmem %s8, %s541
        $region52: #{tpu_custom_call.1} parent=15 // pred_fallthru
          _
        // Predicated region
        $region53: #{tpu_custom_call.1} parent=15 // pred_check
          %p543 = pneg %p300
        $region54: #{tpu_custom_call.1} parent=15 // pred_check_branch
          %545 = sbr.rel (%p543) target = $region56
        $region55: #{tpu_custom_call.1} parent=15 // pred_region
          %s546 = sand.u32 %s34, 1
          %s547 = scalar_lea.sflag [#allocation10], %s546
          %s548 = sand.u32 %s290, 1
          %s549 = smul.addr %s548, 128
          %s550 = scalar_lea.vmem [#allocation11], %s549
          %552 = vsyncadd %s547, 0
          %s553 = smul.addr %s42, 32
          %s554 = smul.addr %s553, 4
          %s555 = scalar_lea.hbm %s9, %s554
          %s556 = sshll.u32 %s555, 4
          %s557 = int_to_ptr.hbm [resolvable:$true] %s556
          %s558 = sshll.u32 %s550, 4
          %s559 = int_to_ptr.vmem [resolvable:$true] %s558
          %564 = dma.hbm_to_vmem [thread:$0]  %s557, 2048, %s559, %s547, 128, 128, 8
        $region56: #{tpu_custom_call.1} parent=15 // pred_fallthru
          _
        // Predicated region
        $region57: #{tpu_custom_call.1} parent=15 // pred_check
          %p565 = pneg %p326
        $region58: #{tpu_custom_call.1} parent=15 // pred_check_branch
          %567 = sbr.rel (%p565) target = $region60
        $region59: #{tpu_custom_call.1} parent=15 // pred_region
          %p568 = scmp.lt.s32.totalorder %s42, 1
          %s569 = scalar_select %p568, %s42, 1
          %s570 = smul.addr %s569, 2
          %s571 = scalar_lea.vmem %s10, %s570
        $region60: #{tpu_custom_call.1} parent=15 // pred_fallthru
          _
        // Predicated region
        $region61: #{tpu_custom_call.1} parent=15 // pred_check
          %p572 = pneg %p352
        $region62: #{tpu_custom_call.1} parent=15 // pred_check_branch
          %574 = sbr.rel (%p572) target = $region64
        $region63: #{tpu_custom_call.1} parent=15 // pred_region
          %s575 = sand.u32 %s342, 1
          %s576 = scalar_lea.sflag [#allocation13], %s575
          %s577 = sand.u32 %s342, 1
          %s578 = smul.addr %s577, 128
          %s579 = scalar_lea.vmem [#allocation12], %s578
          %581 = vsyncadd %s576, 0
          %s582 = smul.addr %s42, 32
          %s583 = smul.addr %s582, 4
          %s584 = scalar_lea.hbm %s11, %s583
          %s585 = sshll.u32 %s584, 4
          %s586 = int_to_ptr.hbm [resolvable:$true] %s585
          %s587 = sshll.u32 %s579, 4
          %s588 = int_to_ptr.vmem [resolvable:$true] %s587
          %593 = dma.hbm_to_vmem [thread:$0]  %s586, 2048, %s588, %s576, 64, 64, 4
        $region64: #{tpu_custom_call.1} parent=15 // pred_fallthru
          _
        // Predicated region
        $region65: #{tpu_custom_call.1} parent=15 // pred_check
          %p594 = pneg %p378
        $region66: #{tpu_custom_call.1} parent=15 // pred_check_branch
          %596 = sbr.rel (%p594) target = $region68
        $region67: #{tpu_custom_call.1} parent=15 // pred_region
          %p597 = scmp.lt.s32.totalorder %s42, 1
          %s598 = scalar_select %p597, %s42, 1
          %s599 = scalar_lea.vmem %s12, %s598
        $region68: #{tpu_custom_call.1} parent=15 // pred_fallthru
          _
      $region16: #{tpu_custom_call.1} parent=5 // pred_fallthru
        _
      %p600 = scmp.le.s32.totalorder 1, %s34
      %p601 = scmp.lt.s32.totalorder %s34, 5
      %p602 = pnand %p600, %p601
      %p603 = pneg %p602
      // Predicated region
      $region69: #{tpu_custom_call.1} parent=5 // pred_check
        _
      $region70: #{tpu_custom_call.1} parent=5 // pred_check_branch
        %605 = sbr.rel (%p602) target = $region72
      $region71: #{tpu_custom_call.1} parent=5 // pred_region
        %s606 = ssub.s32 %s34, 1
        %s607 = sand.u32 %s59, 1
        %s608 = scalar_lea.sflag [#allocation4], %s607
        %s609 = sand.u32 %s59, 1
        %s610 = smul.addr %s609, 16
        %s611 = scalar_lea.vmem [#allocation3], %s610
        // Predicated region
        $region73: #{tpu_custom_call.1} parent=71 // pred_check
          %p612 = pneg %p72
        $region74: #{tpu_custom_call.1} parent=71 // pred_check_branch
          %614 = sbr.rel (%p612) target = $region76
        $region75: #{tpu_custom_call.1} parent=71 // pred_region
          %616 = dma.done %s608, 256
        $region76: #{tpu_custom_call.1} parent=71 // pred_fallthru
          _
        %s617 = sand.u32 %s39, 1
        %s618 = scalar_lea.sflag [#allocation7], %s617
        %s619 = sand.u32 %s137, 1
        %s620 = smul.addr %s619, 192
        %s621 = scalar_lea.vmem [#allocation6], %s620
        // Predicated region
        $region77: #{tpu_custom_call.1} parent=71 // pred_check
          %p622 = pneg %p150
        $region78: #{tpu_custom_call.1} parent=71 // pred_check_branch
          %624 = sbr.rel (%p622) target = $region80
        $region79: #{tpu_custom_call.1} parent=71 // pred_region
          %626 = dma.done %s618, 3072
        $region80: #{tpu_custom_call.1} parent=71 // pred_fallthru
          _
        %s627 = sand.u32 %s39, 1
        %s628 = scalar_lea.sflag [#allocation7], %s627
        %s629 = sand.u32 %s189, 1
        %s630 = smul.addr %s629, 64
        %s631 = scalar_lea.vmem [#allocation8], %s630
        // Predicated region
        $region81: #{tpu_custom_call.1} parent=71 // pred_check
          %p632 = pneg %p202
        $region82: #{tpu_custom_call.1} parent=71 // pred_check_branch
          %634 = sbr.rel (%p632) target = $region84
        $region83: #{tpu_custom_call.1} parent=71 // pred_region
          %636 = dma.done %s628, 1024
        $region84: #{tpu_custom_call.1} parent=71 // pred_fallthru
          _
        %s637 = sand.u32 %s39, 1
        %s638 = scalar_lea.sflag [#allocation10], %s637
        %s639 = sand.u32 %s241, 1
        %s640 = scalar_lea.vmem [#allocation9], %s639
        // Predicated region
        $region85: #{tpu_custom_call.1} parent=71 // pred_check
          %p641 = pneg %p254
        $region86: #{tpu_custom_call.1} parent=71 // pred_check_branch
          %643 = sbr.rel (%p641) target = $region88
        $region87: #{tpu_custom_call.1} parent=71 // pred_region
          %645 = dma.done %s638, 16
        $region88: #{tpu_custom_call.1} parent=71 // pred_fallthru
          _
        %s646 = sand.u32 %s39, 1
        %s647 = scalar_lea.sflag [#allocation10], %s646
        %s648 = sand.u32 %s293, 1
        %s649 = smul.addr %s648, 128
        %s650 = scalar_lea.vmem [#allocation11], %s649
        // Predicated region
        $region89: #{tpu_custom_call.1} parent=71 // pred_check
          %p651 = pneg %p306
        $region90: #{tpu_custom_call.1} parent=71 // pred_check_branch
          %653 = sbr.rel (%p651) target = $region92
        $region91: #{tpu_custom_call.1} parent=71 // pred_region
          %655 = dma.done %s647, 2048
        $region92: #{tpu_custom_call.1} parent=71 // pred_fallthru
          _
        %s656 = sand.u32 %s345, 1
        %s657 = scalar_lea.sflag [#allocation13], %s656
        %s658 = sand.u32 %s345, 1
        %s659 = smul.addr %s658, 128
        %s660 = scalar_lea.vmem [#allocation12], %s659
        // Predicated region
        $region93: #{tpu_custom_call.1} parent=71 // pred_check
          %p661 = pneg %p358
        $region94: #{tpu_custom_call.1} parent=71 // pred_check_branch
          %663 = sbr.rel (%p661) target = $region96
        $region95: #{tpu_custom_call.1} parent=71 // pred_region
          %665 = dma.done %s657, 2048
        $region96: #{tpu_custom_call.1} parent=71 // pred_fallthru
          _
        %s666 = sand.u32 %s59, 1
        %s667 = scalar_lea.sflag [#allocation4], %s666
        %s668 = sand.u32 %s59, 1
        %s669 = smul.addr %s668, 16
        %s670 = scalar_lea.vmem [#allocation3], %s669
        %p671 = pneg %p72
        %p672 = pneg %p69
        %p673 = scmp.lt.s32.totalorder %s44, 1
        %s674 = scalar_select %p673, %s44, 1
        %s675 = scalar_lea.vmem %s1, %s674
        %p676 = pneg %p98
        %p677 = pneg %p95
        %p678 = scmp.lt.s32.totalorder %s44, 1
        %s679 = scalar_select %p678, %s44, 1
        %s680 = scalar_lea.vmem %s2, %s679
        %p681 = pneg %p124
        %p682 = pneg %p121
        %s683 = sand.u32 %s39, 1
        %s684 = scalar_lea.sflag [#allocation7], %s683
        %s685 = sand.u32 %s137, 1
        %s686 = smul.addr %s685, 192
        %s687 = scalar_lea.vmem [#allocation6], %s686
        %p688 = pneg %p150
        %p689 = pneg %p147
        %p690 = scmp.lt.s32.totalorder %s44, 1
        %s691 = scalar_select %p690, %s44, 1
        %s692 = smul.addr %s691, 3
        %s693 = scalar_lea.vmem %s4, %s692
        %p694 = pneg %p176
        %p695 = pneg %p173
        %s696 = sand.u32 %s39, 1
        %s697 = scalar_lea.sflag [#allocation7], %s696
        %s698 = sand.u32 %s189, 1
        %s699 = smul.addr %s698, 64
        %s700 = scalar_lea.vmem [#allocation8], %s699
        %p701 = pneg %p202
        %p702 = pneg %p199
        %p703 = scmp.lt.s32.totalorder %s44, 1
        %s704 = scalar_select %p703, %s44, 1
        %s705 = scalar_lea.vmem %s6, %s704
        %p706 = pneg %p228
        %p707 = pneg %p225
        %s708 = sand.u32 %s39, 1
        %s709 = scalar_lea.sflag [#allocation10], %s708
        %s710 = sand.u32 %s241, 1
        %s711 = scalar_lea.vmem [#allocation9], %s710
        %p712 = pneg %p254
        %p713 = pneg %p251
        %p714 = scmp.lt.s32.totalorder %s44, 1
        %s715 = scalar_select %p714, %s44, 1
        %s716 = scalar_lea.vmem %s8, %s715
        %p717 = pneg %p280
        %p718 = pneg %p277
        %s719 = sand.u32 %s39, 1
        %s720 = scalar_lea.sflag [#allocation10], %s719
        %s721 = sand.u32 %s293, 1
        %s722 = smul.addr %s721, 128
        %s723 = scalar_lea.vmem [#allocation11], %s722
        %p724 = pneg %p306
        %p725 = pneg %p303
        %p726 = scmp.lt.s32.totalorder %s44, 1
        %s727 = scalar_select %p726, %s44, 1
        %s728 = smul.addr %s727, 2
        %s729 = scalar_lea.vmem %s10, %s728
        %p730 = pneg %p332
        %p731 = pneg %p329
        %s732 = sand.u32 %s345, 1
        %s733 = scalar_lea.sflag [#allocation13], %s732
        %s734 = sand.u32 %s345, 1
        %s735 = smul.addr %s734, 128
        %s736 = scalar_lea.vmem [#allocation12], %s735
        %p737 = pneg %p358
        %p738 = pneg %p355
        %p739 = scmp.lt.s32.totalorder %s44, 1
        %s740 = scalar_select %p739, %s44, 1
        %s741 = scalar_lea.vmem %s12, %s740
        %p742 = pneg %p384
        %p743 = pneg %p381
        %p744 = pneg %p410
        %p745 = pneg %p407
        %s746 = sand.u32 %s397, 1
        %s747 = scalar_lea.sflag [#allocation5], %s746
        %s748 = sand.u32 %s397, 1
        %s749 = smul.addr %s748, 16
        %s750 = scalar_lea.vmem [#allocation14], %s749
        %s751 = smul.u32 2, %s43
        %p752 = scmp.lt.s32.totalorder %s44, 1
        %s753 = scalar_select %p752, %s44, 1
        %s754 = scalar_lea.vmem %s1, %s753
        %p755 = scmp.lt.s32.totalorder %s44, 1
        %s756 = scalar_select %p755, %s44, 1
        %s757 = scalar_lea.vmem %s2, %s756
        %p758 = scmp.lt.s32.totalorder %s44, 1
        %s759 = scalar_select %p758, %s44, 1
        %s760 = smul.addr %s759, 3
        %s761 = scalar_lea.vmem %s4, %s760
        %p762 = scmp.lt.s32.totalorder %s44, 1
        %s763 = scalar_select %p762, %s44, 1
        %s764 = scalar_lea.vmem %s6, %s763
        %p765 = scmp.lt.s32.totalorder %s44, 1
        %s766 = scalar_select %p765, %s44, 1
        %s767 = scalar_lea.vmem %s8, %s766
        %p768 = scmp.lt.s32.totalorder %s44, 1
        %s769 = scalar_select %p768, %s44, 1
        %s770 = smul.addr %s769, 2
        %s771 = scalar_lea.vmem %s10, %s770
        %p772 = scmp.lt.s32.totalorder %s44, 1
        %s773 = scalar_select %p772, %s44, 1
        %s774 = scalar_lea.vmem %s12, %s773
        %s775 = smul.u32 2, %s43
        %p777 = scmp.eq.s32.totalorder %s44, 0
        // Predicated region
        $region97: #{tpu_custom_call.1} parent=71 // pred_check
          %p778 = pneg %p777
        $region98: #{tpu_custom_call.1} parent=71 // pred_check_branch
          %780 = sbr.rel (%p778) target = $region100
        $region99: #{tpu_custom_call.1} parent=71 // pred_region
          %v781 = vld [vmem:[%s611] sm:$0xff]
          %v782 = vld [vmem:[%s611 + $0x8] sm:$0xff]
          %783 = vst [vmem:[#allocation2] sm:$0xff] %v781
          %784 = vst [vmem:[#allocation2 + $0x8] sm:$0xff] %v782
        $region100: #{tpu_custom_call.1} parent=71 // pred_fallthru
          _
        %v785 = vld [vmem:[#allocation2] sm:$0xff]
        %v786 = vld [vmem:[#allocation2 + $0x8] sm:$0xff]
        %787 = vadd.xlane.f32.xlu0 %v785
        %v788 = vpop.xlane.xlu0 %787
        %789 = vadd.xlane.f32.xlu0 %v786
        %v790 = vpop.xlane.xlu0 %789
        %v791 = vrcp.pop 128.0
        %v792 = vmul.f32 128.0, %v791
        %v793 = vsub.f32 1.0, %v792
        %v794 = vmul.f32 %v791, %v793
        %v795 = vadd.f32 %v791, %v794
        %vm796 = vweird.f32 %v791
        %v797 = vsel %vm796, %v791, %v795
        %v798 = vmul.f32 %v788, %v797
        %v799 = vmul.f32 %v790, %v797
        %v800 = vmul.f32 %v785, %v785
        %v801 = vmul.f32 %v786, %v786
        %802 = vadd.xlane.f32.xlu0 %v800
        %v803 = vpop.xlane.xlu0 %802
        %804 = vadd.xlane.f32.xlu0 %v801
        %v805 = vpop.xlane.xlu0 %804
        %v806 = vmul.f32 %v803, %v797
        %v807 = vmul.f32 %v805, %v797
        %v808 = vmul.f32 %v798, %v798
        %v809 = vmul.f32 %v799, %v799
        %v810 = vsub.f32 %v806, %v808
        %v811 = vsub.f32 %v807, %v809
        %v812 = vmax.f32 %v810, 0.0
        %v813 = vmax.f32 %v811, 0.0
        %v814 = vsub.f32 %v785, %v798
        %v815 = vsub.f32 %v786, %v799
        %v816 = vadd.f32 %v812, 1e-06
        %v817 = vadd.f32 %v813, 1e-06
        %v818 = vrsqrt.pop %v816
        %v819 = vmul.f32 %v818, %v816
        %v820 = vmul.f32 %v819, %v818
        %v821 = vmul.f32 0.5, %v820
        %v822 = vsub.f32 1.5, %v821
        %v823 = vmul.f32 %v818, %v822
        %vm824 = vweird.f32 %v816
        %vm825 = vweird.f32 %v818
        %vm826 = vmor %vm824, %vm825
        %v827 = vsel %vm826, %v818, %v823
        %v828 = vrsqrt.pop %v817
        %v829 = vmul.f32 %v828, %v817
        %v830 = vmul.f32 %v829, %v828
        %v831 = vmul.f32 0.5, %v830
        %v832 = vsub.f32 1.5, %v831
        %v833 = vmul.f32 %v828, %v832
        %vm834 = vweird.f32 %v817
        %vm835 = vweird.f32 %v828
        %vm836 = vmor %vm834, %vm835
        %v837 = vsel %vm836, %v828, %v833
        %v838 = vmul.f32 %v814, %v827
        %v839 = vmul.f32 %v815, %v837
        %v840 = vld [vmem:[%s754] sm:$0x1]
        %v842 = vperm.slane %v840, 0
        %v844 = vmul.f32 %v838, %v842
        %v845 = vmul.f32 %v839, %v842
        %v846 = vld [vmem:[%s757] sm:$0x1]
        %v848 = vperm.slane %v846, 0
        %v850 = vadd.f32 %v844, %v848
        %v851 = vadd.f32 %v845, %v848
        %v852 = vpack.c.bf16 %v851, %v850
        %v853 = vld [vmem:[%s621] sm:$0xff]
        %v854 = vld [vmem:[%s621 + $0x8] sm:$0xf]
        %v855 = vld [vmem:[%s621 + $0xc] sm:$0xff]
        %v856 = vld [vmem:[%s621 + $0x14] sm:$0xf]
        %v857 = vld [vmem:[%s621 + $0x18] sm:$0xff]
        %v858 = vld [vmem:[%s621 + $0x20] sm:$0xf]
        %v859 = vld [vmem:[%s621 + $0x24] sm:$0xff]
        %v860 = vld [vmem:[%s621 + $0x2c] sm:$0xf]
        %v861 = vld [vmem:[%s621 + $0x30] sm:$0xff]
        %v862 = vld [vmem:[%s621 + $0x38] sm:$0xf]
        %v863 = vld [vmem:[%s621 + $0x3c] sm:$0xff]
        %v864 = vld [vmem:[%s621 + $0x44] sm:$0xf]
        %v865 = vld [vmem:[%s621 + $0x48] sm:$0xff]
        %v866 = vld [vmem:[%s621 + $0x50] sm:$0xf]
        %v867 = vld [vmem:[%s621 + $0x54] sm:$0xff]
        %v868 = vld [vmem:[%s621 + $0x5c] sm:$0xf]
        %v869 = vld [vmem:[%s621 + $0x60] sm:$0xff]
        %v870 = vld [vmem:[%s621 + $0x68] sm:$0xf]
        %v871 = vld [vmem:[%s621 + $0x6c] sm:$0xff]
        %v872 = vld [vmem:[%s621 + $0x74] sm:$0xf]
        %v873 = vld [vmem:[%s621 + $0x78] sm:$0xff]
        %v874 = vld [vmem:[%s621 + $0x80] sm:$0xf]
        %v875 = vld [vmem:[%s621 + $0x84] sm:$0xff]
        %v876 = vld [vmem:[%s621 + $0x8c] sm:$0xf]
        %v877 = vld [vmem:[%s621 + $0x90] sm:$0xff]
        %v878 = vld [vmem:[%s621 + $0x98] sm:$0xf]
        %v879 = vld [vmem:[%s621 + $0x9c] sm:$0xff]
        %v880 = vld [vmem:[%s621 + $0xa4] sm:$0xf]
        %v881 = vld [vmem:[%s621 + $0xa8] sm:$0xff]
        %v882 = vld [vmem:[%s621 + $0xb0] sm:$0xf]
        %v883 = vld [vmem:[%s621 + $0xb4] sm:$0xff]
        %v884 = vld [vmem:[%s621 + $0xbc] sm:$0xf]
        %v917 = vunpack.c.l.b16 %v853
        %v918 = vunpack.c.h.b16 %v853
        %v919 = vunpack.c.l.b16 %v854
        %v920 = vunpack.c.l.b16 %v855
        %v921 = vunpack.c.h.b16 %v855
        %v922 = vunpack.c.l.b16 %v856
        %v923 = vunpack.c.l.b16 %v857
        %v924 = vunpack.c.h.b16 %v857
        %v925 = vunpack.c.l.b16 %v858
        %v926 = vunpack.c.l.b16 %v859
        %v927 = vunpack.c.h.b16 %v859
        %v928 = vunpack.c.l.b16 %v860
        %v929 = vunpack.c.l.b16 %v861
        %v930 = vunpack.c.h.b16 %v861
        %v931 = vunpack.c.l.b16 %v862
        %v932 = vunpack.c.l.b16 %v863
        %v933 = vunpack.c.h.b16 %v863
        %v934 = vunpack.c.l.b16 %v864
        %v935 = vunpack.c.l.b16 %v865
        %v936 = vunpack.c.h.b16 %v865
        %v937 = vunpack.c.l.b16 %v866
        %v938 = vunpack.c.l.b16 %v867
        %v939 = vunpack.c.h.b16 %v867
        %v940 = vunpack.c.l.b16 %v868
        %v941 = vunpack.c.l.b16 %v869
        %v942 = vunpack.c.h.b16 %v869
        %v943 = vunpack.c.l.b16 %v870
        %v944 = vunpack.c.l.b16 %v871
        %v945 = vunpack.c.h.b16 %v871
        %v946 = vunpack.c.l.b16 %v872
        %v947 = vunpack.c.l.b16 %v873
        %v948 = vunpack.c.h.b16 %v873
        %v949 = vunpack.c.l.b16 %v874
        %v950 = vunpack.c.l.b16 %v875
        %v951 = vunpack.c.h.b16 %v875
        %v952 = vunpack.c.l.b16 %v876
        %v953 = vunpack.c.l.b16 %v877
        %v954 = vunpack.c.h.b16 %v877
        %v955 = vunpack.c.l.b16 %v878
        %v956 = vunpack.c.l.b16 %v879
        %v957 = vunpack.c.h.b16 %v879
        %v958 = vunpack.c.l.b16 %v880
        %v959 = vunpack.c.l.b16 %v881
        %v960 = vunpack.c.h.b16 %v881
        %v961 = vunpack.c.l.b16 %v882
        %v962 = vunpack.c.l.b16 %v883
        %v963 = vunpack.c.h.b16 %v883
        %v964 = vunpack.c.l.b16 %v884
        %v965 = vpack.c.b16 %v920, %v917
        %v966 = vpack.c.b16 %v921, %v918
        %v967 = vpack.c.b16 %v922, %v919
        %v968 = vpack.c.b16 %v926, %v923
        %v969 = vpack.c.b16 %v927, %v924
        %v970 = vpack.c.b16 %v928, %v925
        %v971 = vpack.c.b16 %v932, %v929
        %v972 = vpack.c.b16 %v933, %v930
        %v973 = vpack.c.b16 %v934, %v931
        %v974 = vpack.c.b16 %v938, %v935
        %v975 = vpack.c.b16 %v939, %v936
        %v976 = vpack.c.b16 %v940, %v937
        %v977 = vpack.c.b16 %v944, %v941
        %v978 = vpack.c.b16 %v945, %v942
        %v979 = vpack.c.b16 %v946, %v943
        %v980 = vpack.c.b16 %v950, %v947
        %v981 = vpack.c.b16 %v951, %v948
        %v982 = vpack.c.b16 %v952, %v949
        %v983 = vpack.c.b16 %v956, %v953
        %v984 = vpack.c.b16 %v957, %v954
        %v985 = vpack.c.b16 %v958, %v955
        %v986 = vpack.c.b16 %v962, %v959
        %v987 = vpack.c.b16 %v963, %v960
        %v988 = vpack.c.b16 %v964, %v961
        %1013 = vmatpush.bf16.msra.mxu0 %v986
        %1014 = vmatpush.bf16.msra.mxu0 %v983
        %1015 = vmatpush.bf16.msra.mxu0 %v980
        %1016 = vmatpush.bf16.msra.mxu0 %v977
        %1017 = vmatpush.bf16.msra.mxu0 %v974
        %1018 = vmatpush.bf16.msra.mxu0 %v971
        %1019 = vmatpush.bf16.msra.mxu0 %v968
        %1020 = vmatpush.bf16.msra.mxu0 %v965
        %1021 = vmatmul.bf16.gmra.mxu0 %v852
        %v1022 = vpop.f32.mrf.mxu0
        %v1023 = vadd.f32 0.0, %v1022
        %v1024 = vpop.f32.mrf.mxu0
        %v1025 = vadd.f32 0.0, %v1024
        %1026 = vdwg.mxu0
        %1027 = vmatpush.bf16.msra.mxu0 %v987
        %1028 = vmatpush.bf16.msra.mxu0 %v984
        %1029 = vmatpush.bf16.msra.mxu0 %v981
        %1030 = vmatpush.bf16.msra.mxu0 %v978
        %1031 = vmatpush.bf16.msra.mxu0 %v975
        %1032 = vmatpush.bf16.msra.mxu0 %v972
        %1033 = vmatpush.bf16.msra.mxu0 %v969
        %1034 = vmatpush.bf16.msra.mxu0 %v966
        %1035 = vmatmul.bf16.gmra.mxu0 %v852
        %v1036 = vpop.f32.mrf.mxu0
        %v1037 = vadd.f32 0.0, %v1036
        %v1038 = vpop.f32.mrf.mxu0
        %v1039 = vadd.f32 0.0, %v1038
        %1040 = vdwg.mxu0
        %1041 = vmatpush.bf16.msra.mxu0 %v988
        %1042 = vmatpush.bf16.msra.mxu0 %v985
        %1043 = vmatpush.bf16.msra.mxu0 %v982
        %1044 = vmatpush.bf16.msra.mxu0 %v979
        %1045 = vmatpush.bf16.msra.mxu0 %v976
        %1046 = vmatpush.bf16.msra.mxu0 %v973
        %1047 = vmatpush.bf16.msra.mxu0 %v970
        %1048 = vmatpush.bf16.msra.mxu0 %v967
        %1049 = vmatmul.bf16.gmra.mxu0 %v852
        %v1050 = vpop.f32.mrf.mxu0
        %v1051 = vadd.f32 0.0, %v1050
        %v1052 = vpop.f32.mrf.mxu0
        %v1053 = vadd.f32 0.0, %v1052
        %1054 = vdwg.mxu0
        %v1055 = vpack.c.bf16 %v1037, %v1023
        %v1056 = vpack.c.bf16 %v1051, %v1051
        %v1057 = vpack.c.bf16 %v1039, %v1025
        %v1058 = vpack.c.bf16 %v1053, %v1053
        %v1059 = vld [vmem:[%s761] sm:$0x7]
        %1061 = vst [vmem:[#allocation1] ss:$9 sm:$0xff] %v1059
        %v1062 = vld [vmem:[#allocation1] sm:$0xff]
        %v1063 = vld [vmem:[#allocation1 + $0x9] sm:$0xff]
        %v1064 = vld [vmem:[#allocation1 + $0x12] sm:$0xff]
        %v1065 = vpack.i.b16 %v1062, %v1062
        %v1067 = vperm.slane %v1065, 0
        %v1068 = vpack.i.b16 %v1063, %v1063
        %v1070 = vperm.slane %v1068, 0
        %v1071 = vpack.i.b16 %v1064, %v1064
        %v1073 = vperm.slane %v1071, 0
        %v1074 = vunpack.c.l.bf16 %v1055
        %v1075 = vunpack.c.h.bf16 %v1055
        %v1076 = vunpack.c.l.bf16 %v1056
        %v1077 = vunpack.c.l.bf16 %v1057
        %v1078 = vunpack.c.h.bf16 %v1057
        %v1079 = vunpack.c.l.bf16 %v1058
        %v1080 = vunpack.c.l.bf16 %v1067
        %v1081 = vunpack.c.l.bf16 %v1070
        %v1082 = vunpack.c.l.bf16 %v1073
        %v1083 = vadd.f32 %v1074, %v1080
        %v1084 = vadd.f32 %v1075, %v1081
        %v1085 = vadd.f32 %v1076, %v1082
        %v1086 = vadd.f32 %v1077, %v1080
        %v1087 = vadd.f32 %v1078, %v1081
        %v1088 = vadd.f32 %v1079, %v1082
        %v1089 = vpack.c.bf16 %v1084, %v1083
        %v1090 = vpack.c.bf16 %v1085, %v1085
        %v1091 = vpack.c.bf16 %v1087, %v1086
        %v1092 = vpack.c.bf16 %v1088, %v1088
        %1095 = vrot.lane.b32.xlu0 %v1089, 64
        %v1096 = vpop.permute.xlu0 %1095
        %1097 = vrot.lane.b32.xlu0 %v1091, 64
        %v1098 = vpop.permute.xlu0 %1097
        %v1101 = vpack.i.b16 %v1096, %v1089
        %v1102 = vshrl.u32 %v1089, 16
        %v1103 = vshrl.u32 %v1096, 16
        %v1104 = vpack.i.b16 %v1103, %v1102
        %v1107 = vpack.i.b16 %v1098, %v1091
        %v1108 = vshrl.u32 %v1091, 16
        %v1109 = vshrl.u32 %v1098, 16
        %v1110 = vpack.i.b16 %v1109, %v1108
        %v1113 = vunpack.c.l.s4 1983009808
        %v1114 = vunpack.c.0.s8 %v1113
        %v1115 = vperm.slane %v1101, %v1114
        %v1116 = vrot.slane %v1115, 4
        %vm1117 = vcmask 1047556
        %v1118 = vsel %vm1117, 0, %v1116
        %v1120 = vunpack.c.l.s4 1934713408
        %v1121 = vunpack.c.0.s8 %v1120
        %v1122 = vperm.slane %v1115, %v1121
        %v1124 = vunpack.c.l.s4 1934713408
        %v1125 = vunpack.c.0.s8 %v1124
        %v1126 = vperm.slane %v1118, %v1125
        %v1127 = vrot.slane %v1122, 4
        %v1128 = vsel %vm1117, 0, %v1127
        %v1129 = vrot.slane %v1126, 4
        %v1130 = vsel %vm1117, 0, %v1129
        %v1133 = vunpack.c.l.s4 1983009808
        %v1134 = vunpack.c.0.s8 %v1133
        %v1135 = vperm.slane %v1104, %v1134
        %v1136 = vrot.slane %v1135, 4
        %v1137 = vsel %vm1117, 0, %v1136
        %v1139 = vunpack.c.l.s4 1934713408
        %v1140 = vunpack.c.0.s8 %v1139
        %v1141 = vperm.slane %v1135, %v1140
        %v1143 = vunpack.c.l.s4 1934713408
        %v1144 = vunpack.c.0.s8 %v1143
        %v1145 = vperm.slane %v1137, %v1144
        %v1146 = vrot.slane %v1141, 4
        %v1147 = vsel %vm1117, 0, %v1146
        %v1148 = vrot.slane %v1145, 4
        %v1149 = vsel %vm1117, 0, %v1148
        %v1152 = vunpack.c.l.s4 1983009808
        %v1153 = vunpack.c.0.s8 %v1152
        %v1154 = vperm.slane %v1107, %v1153
        %v1155 = vrot.slane %v1154, 4
        %v1156 = vsel %vm1117, 0, %v1155
        %v1158 = vunpack.c.l.s4 1934713408
        %v1159 = vunpack.c.0.s8 %v1158
        %v1160 = vperm.slane %v1154, %v1159
        %v1162 = vunpack.c.l.s4 1934713408
        %v1163 = vunpack.c.0.s8 %v1162
        %v1164 = vperm.slane %v1156, %v1163
        %v1165 = vrot.slane %v1160, 4
        %v1166 = vsel %vm1117, 0, %v1165
        %v1167 = vrot.slane %v1164, 4
        %v1168 = vsel %vm1117, 0, %v1167
        %v1171 = vunpack.c.l.s4 1983009808
        %v1172 = vunpack.c.0.s8 %v1171
        %v1173 = vperm.slane %v1110, %v1172
        %v1174 = vrot.slane %v1173, 4
        %v1175 = vsel %vm1117, 0, %v1174
        %v1177 = vunpack.c.l.s4 1934713408
        %v1178 = vunpack.c.0.s8 %v1177
        %v1179 = vperm.slane %v1173, %v1178
        %v1181 = vunpack.c.l.s4 1934713408
        %v1182 = vunpack.c.0.s8 %v1181
        %v1183 = vperm.slane %v1175, %v1182
        %v1184 = vrot.slane %v1179, 4
        %v1185 = vsel %vm1117, 0, %v1184
        %v1186 = vrot.slane %v1183, 4
        %v1187 = vsel %vm1117, 0, %v1186
        %v1188 = vrot.slane %v1089, 4
        %v1189 = vrot.slane %v1091, 4
        %v1190 = vrot.slane %v1096, 4
        %v1191 = vrot.slane %v1098, 4
        %v1194 = vpack.i.b16 %v1190, %v1188
        %v1195 = vshrl.u32 %v1188, 16
        %v1196 = vshrl.u32 %v1190, 16
        %v1197 = vpack.i.b16 %v1196, %v1195
        %v1200 = vpack.i.b16 %v1191, %v1189
        %v1201 = vshrl.u32 %v1189, 16
        %v1202 = vshrl.u32 %v1191, 16
        %v1203 = vpack.i.b16 %v1202, %v1201
        %v1206 = vunpack.c.l.s4 1983009808
        %v1207 = vunpack.c.0.s8 %v1206
        %v1208 = vperm.slane %v1194, %v1207
        %v1209 = vrot.slane %v1208, 4
        %v1210 = vsel %vm1117, 0, %v1209
        %v1212 = vunpack.c.l.s4 1934713408
        %v1213 = vunpack.c.0.s8 %v1212
        %v1214 = vperm.slane %v1208, %v1213
        %v1216 = vunpack.c.l.s4 1934713408
        %v1217 = vunpack.c.0.s8 %v1216
        %v1218 = vperm.slane %v1210, %v1217
        %v1219 = vrot.slane %v1214, 4
        %v1220 = vsel %vm1117, 0, %v1219
        %v1221 = vrot.slane %v1218, 4
        %v1222 = vsel %vm1117, 0, %v1221
        %v1225 = vunpack.c.l.s4 1983009808
        %v1226 = vunpack.c.0.s8 %v1225
        %v1227 = vperm.slane %v1197, %v1226
        %v1228 = vrot.slane %v1227, 4
        %v1229 = vsel %vm1117, 0, %v1228
        %v1231 = vunpack.c.l.s4 1934713408
        %v1232 = vunpack.c.0.s8 %v1231
        %v1233 = vperm.slane %v1227, %v1232
        %v1235 = vunpack.c.l.s4 1934713408
        %v1236 = vunpack.c.0.s8 %v1235
        %v1237 = vperm.slane %v1229, %v1236
        %v1238 = vrot.slane %v1233, 4
        %v1239 = vsel %vm1117, 0, %v1238
        %v1240 = vrot.slane %v1237, 4
        %v1241 = vsel %vm1117, 0, %v1240
        %v1244 = vunpack.c.l.s4 1983009808
        %v1245 = vunpack.c.0.s8 %v1244
        %v1246 = vperm.slane %v1200, %v1245
        %v1247 = vrot.slane %v1246, 4
        %v1248 = vsel %vm1117, 0, %v1247
        %v1250 = vunpack.c.l.s4 1934713408
        %v1251 = vunpack.c.0.s8 %v1250
        %v1252 = vperm.slane %v1246, %v1251
        %v1254 = vunpack.c.l.s4 1934713408
        %v1255 = vunpack.c.0.s8 %v1254
        %v1256 = vperm.slane %v1248, %v1255
        %v1257 = vrot.slane %v1252, 4
        %v1258 = vsel %vm1117, 0, %v1257
        %v1259 = vrot.slane %v1256, 4
        %v1260 = vsel %vm1117, 0, %v1259
        %v1263 = vunpack.c.l.s4 1983009808
        %v1264 = vunpack.c.0.s8 %v1263
        %v1265 = vperm.slane %v1203, %v1264
        %v1266 = vrot.slane %v1265, 4
        %v1267 = vsel %vm1117, 0, %v1266
        %v1269 = vunpack.c.l.s4 1934713408
        %v1270 = vunpack.c.0.s8 %v1269
        %v1271 = vperm.slane %v1265, %v1270
        %v1273 = vunpack.c.l.s4 1934713408
        %v1274 = vunpack.c.0.s8 %v1273
        %v1275 = vperm.slane %v1267, %v1274
        %v1276 = vrot.slane %v1271, 4
        %v1277 = vsel %vm1117, 0, %v1276
        %v1278 = vrot.slane %v1275, 4
        %v1279 = vsel %vm1117, 0, %v1278
        %1282 = vrot.lane.b32.xlu0 %v1090, 64
        %v1283 = vpop.permute.xlu0 %1282
        %1284 = vrot.lane.b32.xlu0 %v1092, 64
        %v1285 = vpop.permute.xlu0 %1284
        %v1288 = vpack.i.b16 %v1283, %v1090
        %v1289 = vshrl.u32 %v1090, 16
        %v1290 = vshrl.u32 %v1283, 16
        %v1291 = vpack.i.b16 %v1290, %v1289
        %v1294 = vpack.i.b16 %v1285, %v1092
        %v1295 = vshrl.u32 %v1092, 16
        %v1296 = vshrl.u32 %v1285, 16
        %v1297 = vpack.i.b16 %v1296, %v1295
        %v1300 = vunpack.c.l.s4 1983009808
        %v1301 = vunpack.c.0.s8 %v1300
        %v1302 = vperm.slane %v1288, %v1301
        %v1303 = vrot.slane %v1302, 4
        %v1304 = vsel %vm1117, 0, %v1303
        %v1306 = vunpack.c.l.s4 1934713408
        %v1307 = vunpack.c.0.s8 %v1306
        %v1308 = vperm.slane %v1302, %v1307
        %v1310 = vunpack.c.l.s4 1934713408
        %v1311 = vunpack.c.0.s8 %v1310
        %v1312 = vperm.slane %v1304, %v1311
        %v1313 = vrot.slane %v1308, 4
        %v1314 = vsel %vm1117, 0, %v1313
        %v1315 = vrot.slane %v1312, 4
        %v1316 = vsel %vm1117, 0, %v1315
        %v1319 = vunpack.c.l.s4 1983009808
        %v1320 = vunpack.c.0.s8 %v1319
        %v1321 = vperm.slane %v1291, %v1320
        %v1322 = vrot.slane %v1321, 4
        %v1323 = vsel %vm1117, 0, %v1322
        %v1325 = vunpack.c.l.s4 1934713408
        %v1326 = vunpack.c.0.s8 %v1325
        %v1327 = vperm.slane %v1321, %v1326
        %v1329 = vunpack.c.l.s4 1934713408
        %v1330 = vunpack.c.0.s8 %v1329
        %v1331 = vperm.slane %v1323, %v1330
        %v1332 = vrot.slane %v1327, 4
        %v1333 = vsel %vm1117, 0, %v1332
        %v1334 = vrot.slane %v1331, 4
        %v1335 = vsel %vm1117, 0, %v1334
        %v1338 = vunpack.c.l.s4 1983009808
        %v1339 = vunpack.c.0.s8 %v1338
        %v1340 = vperm.slane %v1294, %v1339
        %v1341 = vrot.slane %v1340, 4
        %v1342 = vsel %vm1117, 0, %v1341
        %v1344 = vunpack.c.l.s4 1934713408
        %v1345 = vunpack.c.0.s8 %v1344
        %v1346 = vperm.slane %v1340, %v1345
        %v1348 = vunpack.c.l.s4 1934713408
        %v1349 = vunpack.c.0.s8 %v1348
        %v1350 = vperm.slane %v1342, %v1349
        %v1351 = vrot.slane %v1346, 4
        %v1352 = vsel %vm1117, 0, %v1351
        %v1353 = vrot.slane %v1350, 4
        %v1354 = vsel %vm1117, 0, %v1353
        %v1357 = vunpack.c.l.s4 1983009808
        %v1358 = vunpack.c.0.s8 %v1357
        %v1359 = vperm.slane %v1297, %v1358
        %v1360 = vrot.slane %v1359, 4
        %v1361 = vsel %vm1117, 0, %v1360
        %v1363 = vunpack.c.l.s4 1934713408
        %v1364 = vunpack.c.0.s8 %v1363
        %v1365 = vperm.slane %v1359, %v1364
        %v1367 = vunpack.c.l.s4 1934713408
        %v1368 = vunpack.c.0.s8 %v1367
        %v1369 = vperm.slane %v1361, %v1368
        %v1370 = vrot.slane %v1365, 4
        %v1371 = vsel %vm1117, 0, %v1370
        %v1372 = vrot.slane %v1369, 4
        %v1373 = vsel %vm1117, 0, %v1372
        %v1390 = vunpack.c.l.b16 %v1122
        %v1391 = vunpack.c.l.b16 %v1141
        %v1392 = vunpack.c.l.b16 %v1128
        %v1393 = vunpack.c.l.b16 %v1147
        %v1394 = vunpack.c.l.b16 %v1126
        %v1395 = vunpack.c.l.b16 %v1145
        %v1396 = vunpack.c.l.b16 %v1130
        %v1397 = vunpack.c.l.b16 %v1149
        %v1398 = vunpack.c.l.b16 %v1160
        %v1399 = vunpack.c.l.b16 %v1179
        %v1400 = vunpack.c.l.b16 %v1166
        %v1401 = vunpack.c.l.b16 %v1185
        %v1402 = vunpack.c.l.b16 %v1164
        %v1403 = vunpack.c.l.b16 %v1183
        %v1404 = vunpack.c.l.b16 %v1168
        %v1405 = vunpack.c.l.b16 %v1187
        %v1406 = vpack.c.b16 %v1390, %v1390
        %v1407 = vpack.c.b16 %v1391, %v1391
        %v1408 = vpack.c.b16 %v1392, %v1392
        %v1409 = vpack.c.b16 %v1393, %v1393
        %v1410 = vpack.c.b16 %v1394, %v1394
        %v1411 = vpack.c.b16 %v1395, %v1395
        %v1412 = vpack.c.b16 %v1396, %v1396
        %v1413 = vpack.c.b16 %v1397, %v1397
        %v1414 = vpack.c.b16 %v1398, %v1398
        %v1415 = vpack.c.b16 %v1399, %v1399
        %v1416 = vpack.c.b16 %v1400, %v1400
        %v1417 = vpack.c.b16 %v1401, %v1401
        %v1418 = vpack.c.b16 %v1402, %v1402
        %v1419 = vpack.c.b16 %v1403, %v1403
        %v1420 = vpack.c.b16 %v1404, %v1404
        %v1421 = vpack.c.b16 %v1405, %v1405
        %v1422 = vunpack.c.l.b16 %v1406
        %v1423 = vunpack.c.l.b16 %v1407
        %v1424 = vunpack.c.l.b16 %v1408
        %v1425 = vunpack.c.l.b16 %v1409
        %v1426 = vunpack.c.l.b16 %v1410
        %v1427 = vunpack.c.l.b16 %v1411
        %v1428 = vunpack.c.l.b16 %v1412
        %v1429 = vunpack.c.l.b16 %v1413
        %v1430 = vunpack.c.l.b16 %v1414
        %v1431 = vunpack.c.l.b16 %v1415
        %v1432 = vunpack.c.l.b16 %v1416
        %v1433 = vunpack.c.l.b16 %v1417
        %v1434 = vunpack.c.l.b16 %v1418
        %v1435 = vunpack.c.l.b16 %v1419
        %v1436 = vunpack.c.l.b16 %v1420
        %v1437 = vunpack.c.l.b16 %v1421
        %v1438 = vrot.slane %v1423, 7
        %vm1439 = vcmask 1041409
        %v1440 = vsel %vm1439, %v1438, %v1422
        %v1441 = vrot.slane %v1424, 6
        %vm1442 = vcmask 1042434
        %v1443 = vsel %vm1442, %v1441, %v1440
        %v1444 = vrot.slane %v1425, 5
        %vm1445 = vcmask 1043459
        %v1446 = vsel %vm1445, %v1444, %v1443
        %v1447 = vrot.slane %v1426, 4
        %vm1448 = vcmask 1044484
        %v1449 = vsel %vm1448, %v1447, %v1446
        %v1450 = vrot.slane %v1427, 3
        %vm1451 = vcmask 1045509
        %v1452 = vsel %vm1451, %v1450, %v1449
        %v1453 = vrot.slane %v1428, 2
        %vm1454 = vcmask 1046534
        %v1455 = vsel %vm1454, %v1453, %v1452
        %v1456 = vrot.slane %v1429, 1
        %vm1457 = vcmask 1047559
        %v1458 = vsel %vm1457, %v1456, %v1455
        %v1459 = vrot.slane %v1431, 7
        %v1460 = vsel %vm1439, %v1459, %v1430
        %v1461 = vrot.slane %v1432, 6
        %v1462 = vsel %vm1442, %v1461, %v1460
        %v1463 = vrot.slane %v1433, 5
        %v1464 = vsel %vm1445, %v1463, %v1462
        %v1465 = vrot.slane %v1434, 4
        %v1466 = vsel %vm1448, %v1465, %v1464
        %v1467 = vrot.slane %v1435, 3
        %v1468 = vsel %vm1451, %v1467, %v1466
        %v1469 = vrot.slane %v1436, 2
        %v1470 = vsel %vm1454, %v1469, %v1468
        %v1471 = vrot.slane %v1437, 1
        %v1472 = vsel %vm1457, %v1471, %v1470
        %v1473 = vpack.c.b16 %v1472, %v1458
        %v1490 = vunpack.c.l.b16 %v1214
        %v1491 = vunpack.c.l.b16 %v1233
        %v1492 = vunpack.c.l.b16 %v1220
        %v1493 = vunpack.c.l.b16 %v1239
        %v1494 = vunpack.c.l.b16 %v1218
        %v1495 = vunpack.c.l.b16 %v1237
        %v1496 = vunpack.c.l.b16 %v1222
        %v1497 = vunpack.c.l.b16 %v1241
        %v1498 = vunpack.c.l.b16 %v1252
        %v1499 = vunpack.c.l.b16 %v1271
        %v1500 = vunpack.c.l.b16 %v1258
        %v1501 = vunpack.c.l.b16 %v1277
        %v1502 = vunpack.c.l.b16 %v1256
        %v1503 = vunpack.c.l.b16 %v1275
        %v1504 = vunpack.c.l.b16 %v1260
        %v1505 = vunpack.c.l.b16 %v1279
        %v1506 = vpack.c.b16 %v1490, %v1490
        %v1507 = vpack.c.b16 %v1491, %v1491
        %v1508 = vpack.c.b16 %v1492, %v1492
        %v1509 = vpack.c.b16 %v1493, %v1493
        %v1510 = vpack.c.b16 %v1494, %v1494
        %v1511 = vpack.c.b16 %v1495, %v1495
        %v1512 = vpack.c.b16 %v1496, %v1496
        %v1513 = vpack.c.b16 %v1497, %v1497
        %v1514 = vpack.c.b16 %v1498, %v1498
        %v1515 = vpack.c.b16 %v1499, %v1499
        %v1516 = vpack.c.b16 %v1500, %v1500
        %v1517 = vpack.c.b16 %v1501, %v1501
        %v1518 = vpack.c.b16 %v1502, %v1502
        %v1519 = vpack.c.b16 %v1503, %v1503
        %v1520 = vpack.c.b16 %v1504, %v1504
        %v1521 = vpack.c.b16 %v1505, %v1505
        %v1522 = vunpack.c.l.b16 %v1506
        %v1523 = vunpack.c.l.b16 %v1507
        %v1524 = vunpack.c.l.b16 %v1508
        %v1525 = vunpack.c.l.b16 %v1509
        %v1526 = vunpack.c.l.b16 %v1510
        %v1527 = vunpack.c.l.b16 %v1511
        %v1528 = vunpack.c.l.b16 %v1512
        %v1529 = vunpack.c.l.b16 %v1513
        %v1530 = vunpack.c.l.b16 %v1514
        %v1531 = vunpack.c.l.b16 %v1515
        %v1532 = vunpack.c.l.b16 %v1516
        %v1533 = vunpack.c.l.b16 %v1517
        %v1534 = vunpack.c.l.b16 %v1518
        %v1535 = vunpack.c.l.b16 %v1519
        %v1536 = vunpack.c.l.b16 %v1520
        %v1537 = vunpack.c.l.b16 %v1521
        %v1538 = vrot.slane %v1523, 7
        %v1539 = vsel %vm1439, %v1538, %v1522
        %v1540 = vrot.slane %v1524, 6
        %v1541 = vsel %vm1442, %v1540, %v1539
        %v1542 = vrot.slane %v1525, 5
        %v1543 = vsel %vm1445, %v1542, %v1541
        %v1544 = vrot.slane %v1526, 4
        %v1545 = vsel %vm1448, %v1544, %v1543
        %v1546 = vrot.slane %v1527, 3
        %v1547 = vsel %vm1451, %v1546, %v1545
        %v1548 = vrot.slane %v1528, 2
        %v1549 = vsel %vm1454, %v1548, %v1547
        %v1550 = vrot.slane %v1529, 1
        %v1551 = vsel %vm1457, %v1550, %v1549
        %v1552 = vrot.slane %v1531, 7
        %v1553 = vsel %vm1439, %v1552, %v1530
        %v1554 = vrot.slane %v1532, 6
        %v1555 = vsel %vm1442, %v1554, %v1553
        %v1556 = vrot.slane %v1533, 5
        %v1557 = vsel %vm1445, %v1556, %v1555
        %v1558 = vrot.slane %v1534, 4
        %v1559 = vsel %vm1448, %v1558, %v1557
        %v1560 = vrot.slane %v1535, 3
        %v1561 = vsel %vm1451, %v1560, %v1559
        %v1562 = vrot.slane %v1536, 2
        %v1563 = vsel %vm1454, %v1562, %v1561
        %v1564 = vrot.slane %v1537, 1
        %v1565 = vsel %vm1457, %v1564, %v1563
        %v1566 = vpack.c.b16 %v1565, %v1551
        %vm1567 = vcmask 523264
        %v1569 = vsel %vm1567, %v1473, 0
        %v1572 = vsel %vm1567, %v1566, 0
        %1574 = vmatpush.bf16.xpose.msra.mxu0 0
        %1575 = vmatpush.bf16.xpose.msra.mxu0 0
        %1576 = vmatpush.bf16.xpose.msra.mxu0 0
        %1577 = vmatpush.bf16.xpose.msra.mxu0 0
        %1578 = vmatpush.bf16.xpose.msra.mxu0 0
        %1579 = vmatpush.bf16.xpose.msra.mxu0 0
        %1580 = vmatpush.bf16.xpose.msra.mxu0 0
        %1581 = vmatpush.bf16.xpose.msra.mxu0 %v1572
        %1582 = vmatmul.bf16.gmra.mxu0 %v1569
        %v1583 = vpop.f32.mrf.mxu0
        %v1584 = vadd.f32 0.0, %v1583
        %v1585 = vpop.f32.mrf.mxu0
        %v1586 = vadd.f32 0.0, %v1585
        %1587 = vdwg.mxu0
        %vm1588 = vcmask 130048
        %v1589 = vsel %vm1588, %v1584, -inf
        %1590 = vmax.xlane.f32.xlu0 %v1589
        %v1591 = vpop.xlane.xlu0 %1590
        %v1592 = vsel %vm1588, %v1586, -inf
        %1593 = vmax.xlane.f32.xlu0 %v1592
        %v1594 = vpop.xlane.xlu0 %1593
        %v1595 = vsub.f32 %v1584, %v1591
        %v1596 = vsub.f32 %v1586, %v1594
        %v1597 = vmul.f32 %v1595, 1.442695
        %v1598 = vpow.pop %v1597
        %v1599 = vmul.f32 %v1596, 1.442695
        %v1600 = vpow.pop %v1599
        %v1601 = vsel %vm1588, %v1598, 0.0
        %1602 = vadd.xlane.f32.xlu0 %v1601
        %v1603 = vpop.xlane.xlu0 %1602
        %v1604 = vsel %vm1588, %v1600, 0.0
        %1605 = vadd.xlane.f32.xlu0 %v1604
        %v1606 = vpop.xlane.xlu0 %1605
        %v1607 = vrcp.pop %v1603
        %v1608 = vmul.f32 %v1603, %v1607
        %v1609 = vsub.f32 1.0, %v1608
        %v1610 = vmul.f32 %v1607, %v1609
        %v1611 = vadd.f32 %v1607, %v1610
        %vm1612 = vweird.f32 %v1603
        %vm1613 = vweird.f32 %v1607
        %vm1614 = vmor %vm1612, %vm1613
        %v1615 = vsel %vm1614, %v1607, %v1611
        %v1616 = vand.u32 2147483647, %v1603
        %vm1617 = vcmp.eq.f32.partialorder %v1616, 8.507059e+37
        %v1618 = vand.u32 %v1603, 2147483648
        %v1619 = vor.u32 1.1754944e-38, %v1618
        %v1620 = vsel %vm1617, %v1619, %v1615
        %v1621 = vmul.f32 %v1598, %v1620
        %v1622 = vrcp.pop %v1606
        %v1623 = vmul.f32 %v1606, %v1622
        %v1624 = vsub.f32 1.0, %v1623
        %v1625 = vmul.f32 %v1622, %v1624
        %v1626 = vadd.f32 %v1622, %v1625
        %vm1627 = vweird.f32 %v1606
        %vm1628 = vweird.f32 %v1622
        %vm1629 = vmor %vm1627, %vm1628
        %v1630 = vsel %vm1629, %v1622, %v1626
        %v1631 = vand.u32 2147483647, %v1606
        %vm1632 = vcmp.eq.f32.partialorder %v1631, 8.507059e+37
        %v1633 = vand.u32 %v1606, 2147483648
        %v1634 = vor.u32 1.1754944e-38, %v1633
        %v1635 = vsel %vm1632, %v1634, %v1630
        %v1636 = vmul.f32 %v1600, %v1635
        %v1637 = vpack.c.bf16 %v1621, %v1621
        %v1638 = vpack.c.bf16 %v1636, %v1636
        %v1641 = vunpack.c.l.b16 %v1637
        %v1642 = vunpack.c.l.b16 %v1638
        %v1643 = vpack.c.b16 %v1642, %v1641
        %v1660 = vunpack.c.l.b16 %v1308
        %v1661 = vunpack.c.l.b16 %v1327
        %v1662 = vunpack.c.l.b16 %v1314
        %v1663 = vunpack.c.l.b16 %v1333
        %v1664 = vunpack.c.l.b16 %v1312
        %v1665 = vunpack.c.l.b16 %v1331
        %v1666 = vunpack.c.l.b16 %v1316
        %v1667 = vunpack.c.l.b16 %v1335
        %v1668 = vunpack.c.l.b16 %v1346
        %v1669 = vunpack.c.l.b16 %v1365
        %v1670 = vunpack.c.l.b16 %v1352
        %v1671 = vunpack.c.l.b16 %v1371
        %v1672 = vunpack.c.l.b16 %v1350
        %v1673 = vunpack.c.l.b16 %v1369
        %v1674 = vunpack.c.l.b16 %v1354
        %v1675 = vunpack.c.l.b16 %v1373
        %v1676 = vpack.c.b16 %v1660, %v1660
        %v1677 = vpack.c.b16 %v1661, %v1661
        %v1678 = vpack.c.b16 %v1662, %v1662
        %v1679 = vpack.c.b16 %v1663, %v1663
        %v1680 = vpack.c.b16 %v1664, %v1664
        %v1681 = vpack.c.b16 %v1665, %v1665
        %v1682 = vpack.c.b16 %v1666, %v1666
        %v1683 = vpack.c.b16 %v1667, %v1667
        %v1684 = vpack.c.b16 %v1668, %v1668
        %v1685 = vpack.c.b16 %v1669, %v1669
        %v1686 = vpack.c.b16 %v1670, %v1670
        %v1687 = vpack.c.b16 %v1671, %v1671
        %v1688 = vpack.c.b16 %v1672, %v1672
        %v1689 = vpack.c.b16 %v1673, %v1673
        %v1690 = vpack.c.b16 %v1674, %v1674
        %v1691 = vpack.c.b16 %v1675, %v1675
        %v1692 = vunpack.c.l.b16 %v1676
        %v1693 = vunpack.c.l.b16 %v1677
        %v1694 = vunpack.c.l.b16 %v1678
        %v1695 = vunpack.c.l.b16 %v1679
        %v1696 = vunpack.c.l.b16 %v1680
        %v1697 = vunpack.c.l.b16 %v1681
        %v1698 = vunpack.c.l.b16 %v1682
        %v1699 = vunpack.c.l.b16 %v1683
        %v1700 = vunpack.c.l.b16 %v1684
        %v1701 = vunpack.c.l.b16 %v1685
        %v1702 = vunpack.c.l.b16 %v1686
        %v1703 = vunpack.c.l.b16 %v1687
        %v1704 = vunpack.c.l.b16 %v1688
        %v1705 = vunpack.c.l.b16 %v1689
        %v1706 = vunpack.c.l.b16 %v1690
        %v1707 = vunpack.c.l.b16 %v1691
        %v1708 = vrot.slane %v1693, 7
        %v1709 = vsel %vm1439, %v1708, %v1692
        %v1710 = vrot.slane %v1694, 6
        %v1711 = vsel %vm1442, %v1710, %v1709
        %v1712 = vrot.slane %v1695, 5
        %v1713 = vsel %vm1445, %v1712, %v1711
        %v1714 = vrot.slane %v1696, 4
        %v1715 = vsel %vm1448, %v1714, %v1713
        %v1716 = vrot.slane %v1697, 3
        %v1717 = vsel %vm1451, %v1716, %v1715
        %v1718 = vrot.slane %v1698, 2
        %v1719 = vsel %vm1454, %v1718, %v1717
        %v1720 = vrot.slane %v1699, 1
        %v1721 = vsel %vm1457, %v1720, %v1719
        %v1722 = vrot.slane %v1701, 7
        %v1723 = vsel %vm1439, %v1722, %v1700
        %v1724 = vrot.slane %v1702, 6
        %v1725 = vsel %vm1442, %v1724, %v1723
        %v1726 = vrot.slane %v1703, 5
        %v1727 = vsel %vm1445, %v1726, %v1725
        %v1728 = vrot.slane %v1704, 4
        %v1729 = vsel %vm1448, %v1728, %v1727
        %v1730 = vrot.slane %v1705, 3
        %v1731 = vsel %vm1451, %v1730, %v1729
        %v1732 = vrot.slane %v1706, 2
        %v1733 = vsel %vm1454, %v1732, %v1731
        %v1734 = vrot.slane %v1707, 1
        %v1735 = vsel %vm1457, %v1734, %v1733
        %v1736 = vpack.c.b16 %v1735, %v1721
        %v1739 = vsel %vm1588, %v1643, 0
        %1741 = vmatpush.bf16.msra.mxu0 0
        %1742 = vmatpush.bf16.msra.mxu0 0
        %1743 = vmatpush.bf16.msra.mxu0 0
        %1744 = vmatpush.bf16.msra.mxu0 0
        %1745 = vmatpush.bf16.msra.mxu0 0
        %1746 = vmatpush.bf16.msra.mxu0 0
        %1747 = vmatpush.bf16.msra.mxu0 0
        %1748 = vmatpush.bf16.msra.mxu0 %v1736
        %1749 = vmatmul.bf16.gmra.mxu0 %v1739
        %v1750 = vpop.f32.mrf.mxu0
        %v1751 = vadd.f32 0.0, %v1750
        %v1752 = vpop.f32.mrf.mxu0
        %v1753 = vadd.f32 0.0, %v1752
        %1754 = vdwg.mxu0
        %v1755 = vpack.c.bf16 %v1751, %v1751
        %v1756 = vpack.c.bf16 %v1753, %v1753
        %v1757 = vrot.slane %v1422, 1
        %v1758 = vsel %vm1439, %v1423, %v1757
        %v1759 = vrot.slane %v1424, 7
        %v1760 = vsel %vm1442, %v1759, %v1758
        %v1761 = vrot.slane %v1425, 6
        %v1762 = vsel %vm1445, %v1761, %v1760
        %v1763 = vrot.slane %v1426, 5
        %v1764 = vsel %vm1448, %v1763, %v1762
        %v1765 = vrot.slane %v1427, 4
        %v1766 = vsel %vm1451, %v1765, %v1764
        %v1767 = vrot.slane %v1428, 3
        %v1768 = vsel %vm1454, %v1767, %v1766
        %v1769 = vrot.slane %v1429, 2
        %v1770 = vsel %vm1457, %v1769, %v1768
        %v1771 = vrot.slane %v1430, 1
        %v1772 = vsel %vm1439, %v1431, %v1771
        %v1773 = vrot.slane %v1432, 7
        %v1774 = vsel %vm1442, %v1773, %v1772
        %v1775 = vrot.slane %v1433, 6
        %v1776 = vsel %vm1445, %v1775, %v1774
        %v1777 = vrot.slane %v1434, 5
        %v1778 = vsel %vm1448, %v1777, %v1776
        %v1779 = vrot.slane %v1435, 4
        %v1780 = vsel %vm1451, %v1779, %v1778
        %v1781 = vrot.slane %v1436, 3
        %v1782 = vsel %vm1454, %v1781, %v1780
        %v1783 = vrot.slane %v1437, 2
        %v1784 = vsel %vm1457, %v1783, %v1782
        %v1785 = vpack.c.b16 %v1784, %v1770
        %v1786 = vrot.slane %v1522, 1
        %v1787 = vsel %vm1439, %v1523, %v1786
        %v1788 = vrot.slane %v1524, 7
        %v1789 = vsel %vm1442, %v1788, %v1787
        %v1790 = vrot.slane %v1525, 6
        %v1791 = vsel %vm1445, %v1790, %v1789
        %v1792 = vrot.slane %v1526, 5
        %v1793 = vsel %vm1448, %v1792, %v1791
        %v1794 = vrot.slane %v1527, 4
        %v1795 = vsel %vm1451, %v1794, %v1793
        %v1796 = vrot.slane %v1528, 3
        %v1797 = vsel %vm1454, %v1796, %v1795
        %v1798 = vrot.slane %v1529, 2
        %v1799 = vsel %vm1457, %v1798, %v1797
        %v1800 = vrot.slane %v1530, 1
        %v1801 = vsel %vm1439, %v1531, %v1800
        %v1802 = vrot.slane %v1532, 7
        %v1803 = vsel %vm1442, %v1802, %v1801
        %v1804 = vrot.slane %v1533, 6
        %v1805 = vsel %vm1445, %v1804, %v1803
        %v1806 = vrot.slane %v1534, 5
        %v1807 = vsel %vm1448, %v1806, %v1805
        %v1808 = vrot.slane %v1535, 4
        %v1809 = vsel %vm1451, %v1808, %v1807
        %v1810 = vrot.slane %v1536, 3
        %v1811 = vsel %vm1454, %v1810, %v1809
        %v1812 = vrot.slane %v1537, 2
        %v1813 = vsel %vm1457, %v1812, %v1811
        %v1814 = vpack.c.b16 %v1813, %v1799
        %v1816 = vsel %vm1567, %v1785, 0
        %v1819 = vsel %vm1567, %v1814, 0
        %1821 = vmatpush.bf16.xpose.msra.mxu0 0
        %1822 = vmatpush.bf16.xpose.msra.mxu0 0
        %1823 = vmatpush.bf16.xpose.msra.mxu0 0
        %1824 = vmatpush.bf16.xpose.msra.mxu0 0
        %1825 = vmatpush.bf16.xpose.msra.mxu0 0
        %1826 = vmatpush.bf16.xpose.msra.mxu0 0
        %1827 = vmatpush.bf16.xpose.msra.mxu0 0
        %1828 = vmatpush.bf16.xpose.msra.mxu0 %v1819
        %1829 = vmatmul.bf16.gmra.mxu0 %v1816
        %v1830 = vpop.f32.mrf.mxu0
        %v1831 = vadd.f32 0.0, %v1830
        %v1832 = vpop.f32.mrf.mxu0
        %v1833 = vadd.f32 0.0, %v1832
        %1834 = vdwg.mxu0
        %v1835 = vsel %vm1588, %v1831, -inf
        %1836 = vmax.xlane.f32.xlu0 %v1835
        %v1837 = vpop.xlane.xlu0 %1836
        %v1838 = vsel %vm1588, %v1833, -inf
        %1839 = vmax.xlane.f32.xlu0 %v1838
        %v1840 = vpop.xlane.xlu0 %1839
        %v1841 = vsub.f32 %v1831, %v1837
        %v1842 = vsub.f32 %v1833, %v1840
        %v1843 = vmul.f32 %v1841, 1.442695
        %v1844 = vpow.pop %v1843
        %v1845 = vmul.f32 %v1842, 1.442695
        %v1846 = vpow.pop %v1845
        %v1847 = vsel %vm1588, %v1844, 0.0
        %1848 = vadd.xlane.f32.xlu0 %v1847
        %v1849 = vpop.xlane.xlu0 %1848
        %v1850 = vsel %vm1588, %v1846, 0.0
        %1851 = vadd.xlane.f32.xlu0 %v1850
        %v1852 = vpop.xlane.xlu0 %1851
        %v1853 = vrcp.pop %v1849
        %v1854 = vmul.f32 %v1849, %v1853
        %v1855 = vsub.f32 1.0, %v1854
        %v1856 = vmul.f32 %v1853, %v1855
        %v1857 = vadd.f32 %v1853, %v1856
        %vm1858 = vweird.f32 %v1849
        %vm1859 = vweird.f32 %v1853
        %vm1860 = vmor %vm1858, %vm1859
        %v1861 = vsel %vm1860, %v1853, %v1857
        %v1862 = vand.u32 2147483647, %v1849
        %vm1863 = vcmp.eq.f32.partialorder %v1862, 8.507059e+37
        %v1864 = vand.u32 %v1849, 2147483648
        %v1865 = vor.u32 1.1754944e-38, %v1864
        %v1866 = vsel %vm1863, %v1865, %v1861
        %v1867 = vmul.f32 %v1844, %v1866
        %v1868 = vrcp.pop %v1852
        %v1869 = vmul.f32 %v1852, %v1868
        %v1870 = vsub.f32 1.0, %v1869
        %v1871 = vmul.f32 %v1868, %v1870
        %v1872 = vadd.f32 %v1868, %v1871
        %vm1873 = vweird.f32 %v1852
        %vm1874 = vweird.f32 %v1868
        %vm1875 = vmor %vm1873, %vm1874
        %v1876 = vsel %vm1875, %v1868, %v1872
        %v1877 = vand.u32 2147483647, %v1852
        %vm1878 = vcmp.eq.f32.partialorder %v1877, 8.507059e+37
        %v1879 = vand.u32 %v1852, 2147483648
        %v1880 = vor.u32 1.1754944e-38, %v1879
        %v1881 = vsel %vm1878, %v1880, %v1876
        %v1882 = vmul.f32 %v1846, %v1881
        %v1883 = vpack.c.bf16 %v1867, %v1867
        %v1884 = vpack.c.bf16 %v1882, %v1882
        %v1887 = vunpack.c.l.b16 %v1883
        %v1888 = vunpack.c.l.b16 %v1884
        %v1889 = vpack.c.b16 %v1888, %v1887
        %v1890 = vrot.slane %v1692, 1
        %v1891 = vsel %vm1439, %v1693, %v1890
        %v1892 = vrot.slane %v1694, 7
        %v1893 = vsel %vm1442, %v1892, %v1891
        %v1894 = vrot.slane %v1695, 6
        %v1895 = vsel %vm1445, %v1894, %v1893
        %v1896 = vrot.slane %v1696, 5
        %v1897 = vsel %vm1448, %v1896, %v1895
        %v1898 = vrot.slane %v1697, 4
        %v1899 = vsel %vm1451, %v1898, %v1897
        %v1900 = vrot.slane %v1698, 3
        %v1901 = vsel %vm1454, %v1900, %v1899
        %v1902 = vrot.slane %v1699, 2
        %v1903 = vsel %vm1457, %v1902, %v1901
        %v1904 = vrot.slane %v1700, 1
        %v1905 = vsel %vm1439, %v1701, %v1904
        %v1906 = vrot.slane %v1702, 7
        %v1907 = vsel %vm1442, %v1906, %v1905
        %v1908 = vrot.slane %v1703, 6
        %v1909 = vsel %vm1445, %v1908, %v1907
        %v1910 = vrot.slane %v1704, 5
        %v1911 = vsel %vm1448, %v1910, %v1909
        %v1912 = vrot.slane %v1705, 4
        %v1913 = vsel %vm1451, %v1912, %v1911
        %v1914 = vrot.slane %v1706, 3
        %v1915 = vsel %vm1454, %v1914, %v1913
        %v1916 = vrot.slane %v1707, 2
        %v1917 = vsel %vm1457, %v1916, %v1915
        %v1918 = vpack.c.b16 %v1917, %v1903
        %v1921 = vsel %vm1588, %v1889, 0
        %1923 = vmatpush.bf16.msra.mxu0 0
        %1924 = vmatpush.bf16.msra.mxu0 0
        %1925 = vmatpush.bf16.msra.mxu0 0
        %1926 = vmatpush.bf16.msra.mxu0 0
        %1927 = vmatpush.bf16.msra.mxu0 0
        %1928 = vmatpush.bf16.msra.mxu0 0
        %1929 = vmatpush.bf16.msra.mxu0 0
        %1930 = vmatpush.bf16.msra.mxu0 %v1918
        %1931 = vmatmul.bf16.gmra.mxu0 %v1921
        %v1932 = vpop.f32.mrf.mxu0
        %v1933 = vadd.f32 0.0, %v1932
        %v1934 = vpop.f32.mrf.mxu0
        %v1935 = vadd.f32 0.0, %v1934
        %1936 = vdwg.mxu0
        %v1937 = vpack.c.bf16 %v1933, %v1933
        %v1938 = vpack.c.bf16 %v1935, %v1935
        %v1941 = vunpack.c.l.b16 %v1755
        %v1942 = vunpack.c.l.b16 %v1756
        %v1943 = vpack.c.b16 %v1942, %v1941
        %v1946 = vunpack.c.l.b16 %v1937
        %v1947 = vunpack.c.l.b16 %v1938
        %v1948 = vpack.c.b16 %v1947, %v1946
        %1949 = vrot.lane.b32.xlu0 %v1948, 64
        %v1950 = vpop.permute.xlu0 %1949
        %v1953 = vsel %vm1567, %v1943, %v1950
        %v1955 = vld [vmem:[%s631] sm:$0xf]
        %v1956 = vld [vmem:[%s631 + $0x4] sm:$0xf]
        %v1957 = vld [vmem:[%s631 + $0x8] sm:$0xf]
        %v1958 = vld [vmem:[%s631 + $0xc] sm:$0xf]
        %v1959 = vld [vmem:[%s631 + $0x10] sm:$0xf]
        %v1960 = vld [vmem:[%s631 + $0x14] sm:$0xf]
        %v1961 = vld [vmem:[%s631 + $0x18] sm:$0xf]
        %v1962 = vld [vmem:[%s631 + $0x1c] sm:$0xf]
        %v1963 = vld [vmem:[%s631 + $0x20] sm:$0xf]
        %v1964 = vld [vmem:[%s631 + $0x24] sm:$0xf]
        %v1965 = vld [vmem:[%s631 + $0x28] sm:$0xf]
        %v1966 = vld [vmem:[%s631 + $0x2c] sm:$0xf]
        %v1967 = vld [vmem:[%s631 + $0x30] sm:$0xf]
        %v1968 = vld [vmem:[%s631 + $0x34] sm:$0xf]
        %v1969 = vld [vmem:[%s631 + $0x38] sm:$0xf]
        %v1970 = vld [vmem:[%s631 + $0x3c] sm:$0xf]
        %v1971 = vld [vmem:[%s764] sm:$0x1]
        %v1973 = vperm.slane %v1971, 0
        %v1991 = vunpack.c.l.b16 %v1955
        %v1992 = vunpack.c.l.b16 %v1956
        %v1993 = vunpack.c.l.b16 %v1957
        %v1994 = vunpack.c.l.b16 %v1958
        %v1995 = vunpack.c.l.b16 %v1959
        %v1996 = vunpack.c.l.b16 %v1960
        %v1997 = vunpack.c.l.b16 %v1961
        %v1998 = vunpack.c.l.b16 %v1962
        %v1999 = vunpack.c.l.b16 %v1963
        %v2000 = vunpack.c.l.b16 %v1964
        %v2001 = vunpack.c.l.b16 %v1965
        %v2002 = vunpack.c.l.b16 %v1966
        %v2003 = vunpack.c.l.b16 %v1967
        %v2004 = vunpack.c.l.b16 %v1968
        %v2005 = vunpack.c.l.b16 %v1969
        %v2006 = vunpack.c.l.b16 %v1970
        %v2007 = vpack.c.b16 %v1992, %v1991
        %v2008 = vpack.c.b16 %v1994, %v1993
        %v2009 = vpack.c.b16 %v1996, %v1995
        %v2010 = vpack.c.b16 %v1998, %v1997
        %v2011 = vpack.c.b16 %v2000, %v1999
        %v2012 = vpack.c.b16 %v2002, %v2001
        %v2013 = vpack.c.b16 %v2004, %v2003
        %v2014 = vpack.c.b16 %v2006, %v2005
        %2023 = vmatpush.bf16.msra.mxu0 %v2014
        %2024 = vmatpush.bf16.msra.mxu0 %v2013
        %2025 = vmatpush.bf16.msra.mxu0 %v2012
        %2026 = vmatpush.bf16.msra.mxu0 %v2011
        %2027 = vmatpush.bf16.msra.mxu0 %v2010
        %2028 = vmatpush.bf16.msra.mxu0 %v2009
        %2029 = vmatpush.bf16.msra.mxu0 %v2008
        %2030 = vmatpush.bf16.msra.mxu0 %v2007
        %2031 = vmatmul.bf16.gmra.mxu0 %v1953
        %v2032 = vpop.f32.mrf.mxu0
        %v2033 = vadd.f32 %v1973, %v2032
        %v2034 = vpop.f32.mrf.mxu0
        %v2035 = vadd.f32 %v1973, %v2034
        %2036 = vdwg.mxu0
        %v2037 = vadd.f32 %v785, %v2033
        %v2038 = vadd.f32 %v786, %v2035
        %2039 = vadd.xlane.f32.xlu0 %v2037
        %v2040 = vpop.xlane.xlu0 %2039
        %2041 = vadd.xlane.f32.xlu0 %v2038
        %v2042 = vpop.xlane.xlu0 %2041
        %v2043 = vmul.f32 %v2040, %v797
        %v2044 = vmul.f32 %v2042, %v797
        %v2045 = vmul.f32 %v2037, %v2037
        %v2046 = vmul.f32 %v2038, %v2038
        %2047 = vadd.xlane.f32.xlu0 %v2045
        %v2048 = vpop.xlane.xlu0 %2047
        %2049 = vadd.xlane.f32.xlu0 %v2046
        %v2050 = vpop.xlane.xlu0 %2049
        %v2051 = vmul.f32 %v2048, %v797
        %v2052 = vmul.f32 %v2050, %v797
        %v2053 = vmul.f32 %v2043, %v2043
        %v2054 = vmul.f32 %v2044, %v2044
        %v2055 = vsub.f32 %v2051, %v2053
        %v2056 = vsub.f32 %v2052, %v2054
        %v2057 = vmax.f32 %v2055, 0.0
        %v2058 = vmax.f32 %v2056, 0.0
        %v2059 = vsub.f32 %v2037, %v2043
        %v2060 = vsub.f32 %v2038, %v2044
        %v2061 = vadd.f32 %v2057, 1e-06
        %v2062 = vadd.f32 %v2058, 1e-06
        %v2063 = vrsqrt.pop %v2061
        %v2064 = vmul.f32 %v2063, %v2061
        %v2065 = vmul.f32 %v2064, %v2063
        %v2066 = vmul.f32 0.5, %v2065
        %v2067 = vsub.f32 1.5, %v2066
        %v2068 = vmul.f32 %v2063, %v2067
        %vm2069 = vweird.f32 %v2061
        %vm2070 = vweird.f32 %v2063
        %vm2071 = vmor %vm2069, %vm2070
        %v2072 = vsel %vm2071, %v2063, %v2068
        %v2073 = vrsqrt.pop %v2062
        %v2074 = vmul.f32 %v2073, %v2062
        %v2075 = vmul.f32 %v2074, %v2073
        %v2076 = vmul.f32 0.5, %v2075
        %v2077 = vsub.f32 1.5, %v2076
        %v2078 = vmul.f32 %v2073, %v2077
        %vm2079 = vweird.f32 %v2062
        %vm2080 = vweird.f32 %v2073
        %vm2081 = vmor %vm2079, %vm2080
        %v2082 = vsel %vm2081, %v2073, %v2078
        %v2083 = vmul.f32 %v2059, %v2072
        %v2084 = vmul.f32 %v2060, %v2082
        %v2085 = vld [vmem:[%s640] sm:$0x1]
        %v2087 = vperm.slane %v2085, 0
        %v2089 = vmul.f32 %v2083, %v2087
        %v2090 = vmul.f32 %v2084, %v2087
        %v2091 = vld [vmem:[%s767] sm:$0x1]
        %v2093 = vperm.slane %v2091, 0
        %v2095 = vadd.f32 %v2089, %v2093
        %v2096 = vadd.f32 %v2090, %v2093
        %v2097 = vpack.c.bf16 %v2096, %v2095
        %v2098 = vld [vmem:[%s650] sm:$0xff]
        %v2099 = vld [vmem:[%s650 + $0x8] sm:$0xff]
        %v2100 = vld [vmem:[%s650 + $0x10] sm:$0xff]
        %v2101 = vld [vmem:[%s650 + $0x18] sm:$0xff]
        %v2102 = vld [vmem:[%s650 + $0x20] sm:$0xff]
        %v2103 = vld [vmem:[%s650 + $0x28] sm:$0xff]
        %v2104 = vld [vmem:[%s650 + $0x30] sm:$0xff]
        %v2105 = vld [vmem:[%s650 + $0x38] sm:$0xff]
        %v2106 = vld [vmem:[%s650 + $0x40] sm:$0xff]
        %v2107 = vld [vmem:[%s650 + $0x48] sm:$0xff]
        %v2108 = vld [vmem:[%s650 + $0x50] sm:$0xff]
        %v2109 = vld [vmem:[%s650 + $0x58] sm:$0xff]
        %v2110 = vld [vmem:[%s650 + $0x60] sm:$0xff]
        %v2111 = vld [vmem:[%s650 + $0x68] sm:$0xff]
        %v2112 = vld [vmem:[%s650 + $0x70] sm:$0xff]
        %v2113 = vld [vmem:[%s650 + $0x78] sm:$0xff]
        %v2114 = vld [vmem:[%s771] sm:$0x3]
        %v2116 = vperm.slane %v2114, 0
        %v2117 = vperm.slane %v2114, 1
        %v2136 = vunpack.c.l.b16 %v2098
        %v2137 = vunpack.c.h.b16 %v2098
        %v2138 = vunpack.c.l.b16 %v2099
        %v2139 = vunpack.c.h.b16 %v2099
        %v2140 = vunpack.c.l.b16 %v2100
        %v2141 = vunpack.c.h.b16 %v2100
        %v2142 = vunpack.c.l.b16 %v2101
        %v2143 = vunpack.c.h.b16 %v2101
        %v2144 = vunpack.c.l.b16 %v2102
        %v2145 = vunpack.c.h.b16 %v2102
        %v2146 = vunpack.c.l.b16 %v2103
        %v2147 = vunpack.c.h.b16 %v2103
        %v2148 = vunpack.c.l.b16 %v2104
        %v2149 = vunpack.c.h.b16 %v2104
        %v2150 = vunpack.c.l.b16 %v2105
        %v2151 = vunpack.c.h.b16 %v2105
        %v2152 = vunpack.c.l.b16 %v2106
        %v2153 = vunpack.c.h.b16 %v2106
        %v2154 = vunpack.c.l.b16 %v2107
        %v2155 = vunpack.c.h.b16 %v2107
        %v2156 = vunpack.c.l.b16 %v2108
        %v2157 = vunpack.c.h.b16 %v2108
        %v2158 = vunpack.c.l.b16 %v2109
        %v2159 = vunpack.c.h.b16 %v2109
        %v2160 = vunpack.c.l.b16 %v2110
        %v2161 = vunpack.c.h.b16 %v2110
        %v2162 = vunpack.c.l.b16 %v2111
        %v2163 = vunpack.c.h.b16 %v2111
        %v2164 = vunpack.c.l.b16 %v2112
        %v2165 = vunpack.c.h.b16 %v2112
        %v2166 = vunpack.c.l.b16 %v2113
        %v2167 = vunpack.c.h.b16 %v2113
        %v2168 = vpack.c.b16 %v2138, %v2136
        %v2169 = vpack.c.b16 %v2139, %v2137
        %v2170 = vpack.c.b16 %v2142, %v2140
        %v2171 = vpack.c.b16 %v2143, %v2141
        %v2172 = vpack.c.b16 %v2146, %v2144
        %v2173 = vpack.c.b16 %v2147, %v2145
        %v2174 = vpack.c.b16 %v2150, %v2148
        %v2175 = vpack.c.b16 %v2151, %v2149
        %v2176 = vpack.c.b16 %v2154, %v2152
        %v2177 = vpack.c.b16 %v2155, %v2153
        %v2178 = vpack.c.b16 %v2158, %v2156
        %v2179 = vpack.c.b16 %v2159, %v2157
        %v2180 = vpack.c.b16 %v2162, %v2160
        %v2181 = vpack.c.b16 %v2163, %v2161
        %v2182 = vpack.c.b16 %v2166, %v2164
        %v2183 = vpack.c.b16 %v2167, %v2165
        %2200 = vmatpush.bf16.msra.mxu0 %v2182
        %2201 = vmatpush.bf16.msra.mxu0 %v2180
        %2202 = vmatpush.bf16.msra.mxu0 %v2178
        %2203 = vmatpush.bf16.msra.mxu0 %v2176
        %2204 = vmatpush.bf16.msra.mxu0 %v2174
        %2205 = vmatpush.bf16.msra.mxu0 %v2172
        %2206 = vmatpush.bf16.msra.mxu0 %v2170
        %2207 = vmatpush.bf16.msra.mxu0 %v2168
        %2208 = vmatmul.bf16.gmra.mxu0 %v2097
        %v2209 = vpop.f32.mrf.mxu0
        %v2210 = vadd.f32 %v2116, %v2209
        %v2211 = vpop.f32.mrf.mxu0
        %v2212 = vadd.f32 %v2116, %v2211
        %2213 = vdwg.mxu0
        %2214 = vmatpush.bf16.msra.mxu0 %v2183
        %2215 = vmatpush.bf16.msra.mxu0 %v2181
        %2216 = vmatpush.bf16.msra.mxu0 %v2179
        %2217 = vmatpush.bf16.msra.mxu0 %v2177
        %2218 = vmatpush.bf16.msra.mxu0 %v2175
        %2219 = vmatpush.bf16.msra.mxu0 %v2173
        %2220 = vmatpush.bf16.msra.mxu0 %v2171
        %2221 = vmatpush.bf16.msra.mxu0 %v2169
        %2222 = vmatmul.bf16.gmra.mxu0 %v2097
        %v2223 = vpop.f32.mrf.mxu0
        %v2224 = vadd.f32 %v2117, %v2223
        %v2225 = vpop.f32.mrf.mxu0
        %v2226 = vadd.f32 %v2117, %v2225
        %2227 = vdwg.mxu0
        %v2228 = vmul.f32 %v2210, 0.5
        %v2229 = vmul.f32 %v2224, 0.5
        %v2230 = vmul.f32 %v2212, 0.5
        %v2231 = vmul.f32 %v2226, 0.5
        %v2232 = vmul.f32 %v2210, 0.044715
        %v2233 = vmul.f32 %v2224, 0.044715
        %v2234 = vmul.f32 %v2212, 0.044715
        %v2235 = vmul.f32 %v2226, 0.044715
        %v2236 = vmul.f32 %v2232, %v2210
        %v2237 = vmul.f32 %v2233, %v2224
        %v2238 = vmul.f32 %v2234, %v2212
        %v2239 = vmul.f32 %v2235, %v2226
        %v2240 = vmul.f32 %v2236, %v2210
        %v2241 = vmul.f32 %v2237, %v2224
        %v2242 = vmul.f32 %v2238, %v2212
        %v2243 = vmul.f32 %v2239, %v2226
        %v2244 = vadd.f32 %v2210, %v2240
        %v2245 = vadd.f32 %v2224, %v2241
        %v2246 = vadd.f32 %v2212, %v2242
        %v2247 = vadd.f32 %v2226, %v2243
        %v2248 = vmul.f32 %v2244, 0.7978846
        %v2249 = vmul.f32 %v2245, 0.7978846
        %v2250 = vmul.f32 %v2246, 0.7978846
        %v2251 = vmul.f32 %v2247, 0.7978846
        %v2252 = vtanh.pop %v2248
        %v2253 = vtanh.pop %v2249
        %v2254 = vtanh.pop %v2250
        %v2255 = vtanh.pop %v2251
        %v2256 = vadd.f32 %v2252, 1.0
        %v2257 = vadd.f32 %v2253, 1.0
        %v2258 = vadd.f32 %v2254, 1.0
        %v2259 = vadd.f32 %v2255, 1.0
        %v2260 = vmul.f32 %v2228, %v2256
        %v2261 = vmul.f32 %v2229, %v2257
        %v2262 = vmul.f32 %v2230, %v2258
        %v2263 = vmul.f32 %v2231, %v2259
        %v2264 = vpack.c.bf16 %v2262, %v2260
        %v2265 = vpack.c.bf16 %v2263, %v2261
        %v2266 = vld [vmem:[%s660] sm:$0xf]
        %v2267 = vld [vmem:[%s660 + $0x4] sm:$0xf]
        %v2268 = vld [vmem:[%s660 + $0x8] sm:$0xf]
        %v2269 = vld [vmem:[%s660 + $0xc] sm:$0xf]
        %v2270 = vld [vmem:[%s660 + $0x10] sm:$0xf]
        %v2271 = vld [vmem:[%s660 + $0x14] sm:$0xf]
        %v2272 = vld [vmem:[%s660 + $0x18] sm:$0xf]
        %v2273 = vld [vmem:[%s660 + $0x1c] sm:$0xf]
        %v2274 = vld [vmem:[%s660 + $0x20] sm:$0xf]
        %v2275 = vld [vmem:[%s660 + $0x24] sm:$0xf]
        %v2276 = vld [vmem:[%s660 + $0x28] sm:$0xf]
        %v2277 = vld [vmem:[%s660 + $0x2c] sm:$0xf]
        %v2278 = vld [vmem:[%s660 + $0x30] sm:$0xf]
        %v2279 = vld [vmem:[%s660 + $0x34] sm:$0xf]
        %v2280 = vld [vmem:[%s660 + $0x38] sm:$0xf]
        %v2281 = vld [vmem:[%s660 + $0x3c] sm:$0xf]
        %v2282 = vld [vmem:[%s660 + $0x40] sm:$0xf]
        %v2283 = vld [vmem:[%s660 + $0x44] sm:$0xf]
        %v2284 = vld [vmem:[%s660 + $0x48] sm:$0xf]
        %v2285 = vld [vmem:[%s660 + $0x4c] sm:$0xf]
        %v2286 = vld [vmem:[%s660 + $0x50] sm:$0xf]
        %v2287 = vld [vmem:[%s660 + $0x54] sm:$0xf]
        %v2288 = vld [vmem:[%s660 + $0x58] sm:$0xf]
        %v2289 = vld [vmem:[%s660 + $0x5c] sm:$0xf]
        %v2290 = vld [vmem:[%s660 + $0x60] sm:$0xf]
        %v2291 = vld [vmem:[%s660 + $0x64] sm:$0xf]
        %v2292 = vld [vmem:[%s660 + $0x68] sm:$0xf]
        %v2293 = vld [vmem:[%s660 + $0x6c] sm:$0xf]
        %v2294 = vld [vmem:[%s660 + $0x70] sm:$0xf]
        %v2295 = vld [vmem:[%s660 + $0x74] sm:$0xf]
        %v2296 = vld [vmem:[%s660 + $0x78] sm:$0xf]
        %v2297 = vld [vmem:[%s660 + $0x7c] sm:$0xf]
        %v2298 = vld [vmem:[%s774] sm:$0x1]
        %v2300 = vperm.slane %v2298, 0
        %v2334 = vunpack.c.l.b16 %v2266
        %v2335 = vunpack.c.l.b16 %v2267
        %v2336 = vunpack.c.l.b16 %v2268
        %v2337 = vunpack.c.l.b16 %v2269
        %v2338 = vunpack.c.l.b16 %v2270
        %v2339 = vunpack.c.l.b16 %v2271
        %v2340 = vunpack.c.l.b16 %v2272
        %v2341 = vunpack.c.l.b16 %v2273
        %v2342 = vunpack.c.l.b16 %v2274
        %v2343 = vunpack.c.l.b16 %v2275
        %v2344 = vunpack.c.l.b16 %v2276
        %v2345 = vunpack.c.l.b16 %v2277
        %v2346 = vunpack.c.l.b16 %v2278
        %v2347 = vunpack.c.l.b16 %v2279
        %v2348 = vunpack.c.l.b16 %v2280
        %v2349 = vunpack.c.l.b16 %v2281
        %v2350 = vunpack.c.l.b16 %v2282
        %v2351 = vunpack.c.l.b16 %v2283
        %v2352 = vunpack.c.l.b16 %v2284
        %v2353 = vunpack.c.l.b16 %v2285
        %v2354 = vunpack.c.l.b16 %v2286
        %v2355 = vunpack.c.l.b16 %v2287
        %v2356 = vunpack.c.l.b16 %v2288
        %v2357 = vunpack.c.l.b16 %v2289
        %v2358 = vunpack.c.l.b16 %v2290
        %v2359 = vunpack.c.l.b16 %v2291
        %v2360 = vunpack.c.l.b16 %v2292
        %v2361 = vunpack.c.l.b16 %v2293
        %v2362 = vunpack.c.l.b16 %v2294
        %v2363 = vunpack.c.l.b16 %v2295
        %v2364 = vunpack.c.l.b16 %v2296
        %v2365 = vunpack.c.l.b16 %v2297
        %v2366 = vpack.c.b16 %v2335, %v2334
        %v2367 = vpack.c.b16 %v2337, %v2336
        %v2368 = vpack.c.b16 %v2339, %v2338
        %v2369 = vpack.c.b16 %v2341, %v2340
        %v2370 = vpack.c.b16 %v2343, %v2342
        %v2371 = vpack.c.b16 %v2345, %v2344
        %v2372 = vpack.c.b16 %v2347, %v2346
        %v2373 = vpack.c.b16 %v2349, %v2348
        %v2374 = vpack.c.b16 %v2351, %v2350
        %v2375 = vpack.c.b16 %v2353, %v2352
        %v2376 = vpack.c.b16 %v2355, %v2354
        %v2377 = vpack.c.b16 %v2357, %v2356
        %v2378 = vpack.c.b16 %v2359, %v2358
        %v2379 = vpack.c.b16 %v2361, %v2360
        %v2380 = vpack.c.b16 %v2363, %v2362
        %v2381 = vpack.c.b16 %v2365, %v2364
        %2398 = vmatpush.bf16.msra.mxu0 %v2373
        %2399 = vmatpush.bf16.msra.mxu0 %v2372
        %2400 = vmatpush.bf16.msra.mxu0 %v2371
        %2401 = vmatpush.bf16.msra.mxu0 %v2370
        %2402 = vmatpush.bf16.msra.mxu0 %v2369
        %2403 = vmatpush.bf16.msra.mxu0 %v2368
        %2404 = vmatpush.bf16.msra.mxu0 %v2367
        %2405 = vmatpush.bf16.msra.mxu0 %v2366
        %2406 = vmatmul.bf16.gmra.mxu0 %v2264
        %v2407 = vpop.f32.mrf.mxu0
        %v2408 = vadd.f32 %v2300, %v2407
        %v2409 = vpop.f32.mrf.mxu0
        %v2410 = vadd.f32 %v2300, %v2409
        %2411 = vdwg.mxu0
        %2412 = vmatpush.bf16.msra.mxu0 %v2381
        %2413 = vmatpush.bf16.msra.mxu0 %v2380
        %2414 = vmatpush.bf16.msra.mxu0 %v2379
        %2415 = vmatpush.bf16.msra.mxu0 %v2378
        %2416 = vmatpush.bf16.msra.mxu0 %v2377
        %2417 = vmatpush.bf16.msra.mxu0 %v2376
        %2418 = vmatpush.bf16.msra.mxu0 %v2375
        %2419 = vmatpush.bf16.msra.mxu0 %v2374
        %2420 = vmatmul.bf16.gmra.mxu0 %v2265
        %v2421 = vpop.f32.mrf.mxu0
        %v2422 = vadd.f32 %v2408, %v2421
        %v2423 = vpop.f32.mrf.mxu0
        %v2424 = vadd.f32 %v2410, %v2423
        %2425 = vdwg.mxu0
        %v2426 = vadd.f32 %v2037, %v2422
        %v2427 = vadd.f32 %v2038, %v2424
        %2428 = vst [vmem:[#allocation2] sm:$0xff] %v2426
        %2429 = vst [vmem:[#allocation2 + $0x8] sm:$0xff] %v2427
        %p2430 = scmp.eq.s32.totalorder %s44, 1
        // Predicated region
        $region101: #{tpu_custom_call.1} parent=71 // pred_check
          %p2431 = pneg %p2430
        $region102: #{tpu_custom_call.1} parent=71 // pred_check_branch
          %2433 = sbr.rel (%p2431) target = $region104
        $region103: #{tpu_custom_call.1} parent=71 // pred_region
          %2434 = vst [vmem:[%s750] sm:$0xff] %v2426
          %2435 = vst [vmem:[%s750 + $0x8] sm:$0xff] %v2427
        $region104: #{tpu_custom_call.1} parent=71 // pred_fallthru
          _
        %s2436 = sand.u32 %s397, 1
        %s2437 = scalar_lea.sflag [#allocation5], %s2436
        %s2438 = sand.u32 %s397, 1
        %s2439 = smul.addr %s2438, 16
        %s2440 = scalar_lea.vmem [#allocation14], %s2439
        // Predicated region
        $region105: #{tpu_custom_call.1} parent=71 // pred_check
          %p2441 = pneg %p407
        $region106: #{tpu_custom_call.1} parent=71 // pred_check_branch
          %2443 = sbr.rel (%p2441) target = $region108
        $region107: #{tpu_custom_call.1} parent=71 // pred_region
          %s2444 = smul.u32 2, %s43
          %2446 = vsyncadd %s2437, 0
          %s2447 = smul.addr %s2444, 8
          %s2448 = scalar_lea.hbm %s13, %s2447
          %s2449 = sshll.u32 %s2440, 4
          %s2450 = int_to_ptr.vmem [resolvable:$true] %s2449
          %s2451 = sshll.u32 %s2448, 4
          %s2452 = int_to_ptr.hbm [resolvable:$true] %s2451
          %2457 = dma.vmem_to_hbm [thread:$0]  %s2450, 256, %s2452, %s2437, 128, 128, 8
        $region108: #{tpu_custom_call.1} parent=71 // pred_fallthru
          _
      $region72: #{tpu_custom_call.1} parent=5 // pred_fallthru
        _
      %p2458 = scmp.le.s32.totalorder 2, %s34
      // Predicated region
      $region109: #{tpu_custom_call.1} parent=5 // pred_check
        %p2459 = pneg %p2458
      $region110: #{tpu_custom_call.1} parent=5 // pred_check_branch
        %2461 = sbr.rel (%p2459) target = $region112
      $region111: #{tpu_custom_call.1} parent=5 // pred_region
        %s2462 = ssub.s32 %s34, 2
        // Predicated region
        $region113: #{tpu_custom_call.1} parent=111 // pred_check
          %p2463 = pneg %p413
        $region114: #{tpu_custom_call.1} parent=111 // pred_check_branch
          %2465 = sbr.rel (%p2463) target = $region116
        $region115: #{tpu_custom_call.1} parent=111 // pred_region
          %s2466 = sand.u32 %s398, 1
          %s2467 = scalar_lea.sflag [#allocation5], %s2466
          %s2468 = sand.u32 %s398, 1
          %s2469 = smul.addr %s2468, 16
          %s2470 = scalar_lea.vmem [#allocation14], %s2469
          %2472 = dma.done %s2467, 256
        $region116: #{tpu_custom_call.1} parent=111 // pred_fallthru
          _
      $region112: #{tpu_custom_call.1} parent=5 // pred_fallthru
        _
    $region6: #{tpu_custom_call.1} parent=1 // loop_footer
      %s38 = sadd.s32 1, %s34
    $region7: #{tpu_custom_call.1} parent=1 // loop_footer_branch
      %33 = sbr.rel target = $region3
    $region8: #{tpu_custom_call.1} parent=1 // loop_exit
      _
    %2473 = vsyncpa [#allocation4], 1
    %s2474 = scalar_lea.sflag [#allocation4], 1
    %2475 = vsyncpa %s2474, 1
    %2476 = vsyncpa [#allocation7], 1
    %s2477 = scalar_lea.sflag [#allocation7], 1
    %2478 = vsyncpa %s2477, 1
    %2479 = vsyncpa [#allocation10], 1
    %s2480 = scalar_lea.sflag [#allocation10], 1
    %2481 = vsyncpa %s2480, 1
    %2482 = vsyncpa [#allocation13], 1
    %s2483 = scalar_lea.sflag [#allocation13], 1
    %2484 = vsyncpa %s2483, 1
    %2485 = vsyncpa [#allocation5], 1
    %s2486 = scalar_lea.sflag [#allocation5], 1
    %2487 = vsyncpa %s2486, 1

</llo_original>
